<compile_context>
chip_gen: v6e
topology: v6e:2x2x1
jax: 0.10.0
libtpu: 0.0.40
codegen_flags: <defaults>
</compile_context>

<pallas_src>
import jax
import jax.numpy as jnp
from jax.experimental import pallas as pl
from jax.experimental.pallas import tpu as pltpu


# ---------------------------------------------------------------------------
# Pallas kernel: batched crop+resize as two wide (channel-fused) MXU matmuls
# ---------------------------------------------------------------------------
def _crop_resize_kernel(img_ref, ry_ref, rxt_ref, out_ref, tmp_ref):
    # img_ref : (1, H, C*W)    bf16 image slab, channels packed along lanes
    # ry_ref  : (1, S, H)      bf16 row-interpolation matrix
    # rxt_ref : (1, W, S)      bf16 transposed column-interpolation matrix
    # out_ref : (1, C, S, S)   bf16 resized face
    # tmp_ref : (C*S, W)       bf16 VMEM scratch (stage-1 result, repacked)
    num_ch = out_ref.shape[1]
    s_out = out_ref.shape[2]
    w_in = rxt_ref.shape[1]

    # Stage 1: (S, H) @ (H, C*W) -> (S, C*W)   [one wide MXU dot, f32 acc]
    tmp = jnp.dot(ry_ref[0], img_ref[0], preferred_element_type=jnp.float32)

    # Repack (S, C*W) -> (C*S, W) into VMEM scratch (static, lane-aligned slices)
    for c in range(num_ch):
        tmp_ref[c * s_out:(c + 1) * s_out, :] = (
            tmp[:, c * w_in:(c + 1) * w_in].astype(tmp_ref.dtype))

    # Stage 2: (C*S, W) @ (W, S) -> (C*S, S)   [one wide MXU dot, f32 acc]
    res = jnp.dot(tmp_ref[...], rxt_ref[0], preferred_element_type=jnp.float32)

    for c in range(num_ch):
        out_ref[0, c] = res[c * s_out:(c + 1) * s_out, :].astype(out_ref.dtype)


def crop_resize_batch(imgs, ry, rxt):
    """faces[b, c] = ry[b] @ imgs[b, c] @ rxt[b] via a channel-fused Pallas kernel."""
    B, C, H, W = imgs.shape
    S = ry.shape[1]
    assert ry.shape == (B, S, H) and rxt.shape == (B, W, S)

    # bf16 operands (native MXU path), channels packed along the lane dim.
    imgs_t = imgs.astype(jnp.bfloat16).transpose(0, 2, 1, 3).reshape(B, H, C * W)
    ry_b = ry.astype(jnp.bfloat16)
    rxt_b = rxt.astype(jnp.bfloat16)

    cost = pl.CostEstimate(
        flops=2 * B * (S * H * C * W + C * S * W * S),
        transcendentals=0,
        bytes_accessed=2 * (B * H * C * W + B * S * H + B * W * S + B * C * S * S),
    )

    return pl.pallas_call(
        _crop_resize_kernel,
        out_shape=jax.ShapeDtypeStruct((B, C, S, S), jnp.bfloat16),
        grid_spec=pltpu.PrefetchScalarGridSpec(
            num_scalar_prefetch=0,
            grid=(B,),
            in_specs=[
                pl.BlockSpec((1, H, C * W), lambda b: (b, 0, 0)),
                pl.BlockSpec((1, S, H), lambda b: (b, 0, 0)),
                pl.BlockSpec((1, W, S), lambda b: (b, 0, 0)),
            ],
            out_specs=pl.BlockSpec((1, C, S, S), lambda b: (b, 0, 0, 0)),
            scratch_shapes=[pltpu.VMEM((C * S, W), jnp.bfloat16)],
        ),
        compiler_params=pltpu.CompilerParams(
            dimension_semantics=("parallel",)),
        cost_estimate=cost,
    )(imgs_t, ry_b, rxt_b)


# ---------------------------------------------------------------------------
# Host-side glue: extract_face box math + interpolation-matrix construction
# ---------------------------------------------------------------------------
def _expand_box(box, raw_w, raw_h, image_size, margin):
    # Mirrors GetFace.extract_face margin expansion + clamping (scalar host math),
    # with the crop extent clamped to >= 1 so Ry/Rx never degenerate.
    x0, y0, x1, y1 = [float(v) for v in box]
    mx = margin * (x1 - x0) / (image_size - margin)
    my = margin * (y1 - y0) / (image_size - margin)
    x0c = int(max(x0 - mx / 2.0, 0))
    y0c = int(max(y0 - my / 2.0, 0))
    x1c = int(min(x1 + mx / 2.0, raw_w))
    y1c = int(min(y1 + my / 2.0, raw_h))
    x1c = max(x1c, x0c + 1)
    y1c = max(y1c, y0c + 1)
    return x0c, y0c, x1c, y1c


def _interp_matrix(lo, hi, in_size, out_size):
    # Bilinear (half-pixel centers) from crop [lo, hi) to out_size samples,
    # expressed as a dense (out_size, in_size) matrix over the FULL input axis
    # (the crop is folded into which columns are nonzero).
    crop = hi - lo
    scale = crop / float(out_size)
    i = jnp.arange(out_size, dtype=jnp.float32)
    src = lo + (i + 0.5) * scale - 0.5
    src = jnp.clip(src, float(lo), float(hi - 1))
    i0 = jnp.floor(src).astype(jnp.int32)
    frac = src - i0.astype(jnp.float32)
    i1 = jnp.minimum(i0 + 1, hi - 1)
    w = (jax.nn.one_hot(i0, in_size, dtype=jnp.float32) * (1.0 - frac)[:, None]
         + jax.nn.one_hot(i1, in_size, dtype=jnp.float32) * frac[:, None])
    return w  # rows are convex combinations (sum to 1)


def get_face_forward(imgs, boxes, image_size=256, margin=10):
    """Batched extract_face(): margin-expanded crop + bilinear resize to
    (image_size, image_size) for each image given its detected box."""
    B, C, H, W = imgs.shape
    ry_list, rxt_list = [], []
    for b in range(B):
        bx0, by0, bx1, by1 = _expand_box(boxes[b], W, H, image_size, margin)
        ry_list.append(_interp_matrix(by0, by1, H, image_size))        # (S, H)
        rxt_list.append(_interp_matrix(bx0, bx1, W, image_size).T)     # (W, S)
    ry = jnp.stack(ry_list)
    rxt = jnp.stack(rxt_list)
    faces = crop_resize_batch(imgs, ry, rxt)
    return faces, (ry, rxt)


def _reference(imgs, ry, rxt):
    # pure-jnp f32 reference: same separable bilinear crop+resize
    tmp = jnp.einsum('bsh,bchw->bcsw', ry, imgs)
    return jnp.einsum('bcsw,bwt->bcst', tmp, rxt)


if __name__ == "__main__":
    B, C, H, W = 2, 3, 128, 128     # lane-dense source (W multiple of 128)
    S = 256                         # image_size (lane-dense output)

    key = jax.random.PRNGKey(0)
    imgs = jax.random.uniform(key, (B, C, H, W), dtype=jnp.float32)

    # deterministic synthetic "detected" boxes (stand-in for MTCNN output)
    boxes = [(20.0, 12.0, 100.0, 110.0),
             (8.0, 30.0, 90.0, 120.0)]

    faces, (ry, rxt) = get_face_forward(imgs, boxes, image_size=S, margin=10)
    jax.block_until_ready(faces)

    ref = _reference(imgs, ry, rxt)
    assert faces.shape == (B, C, S, S)
    assert jnp.allclose(faces.astype(jnp.float32), ref, atol=2.5e-2, rtol=2.5e-2)

    print("KERNEL_OK")
</pallas_src>

<mosaic_0001>
module attributes {stable_mosaic.version = 11 : i64} {
  func.func @_crop_resize_kernel(%arg0: i32, %arg1: memref<1x128x384xbf16, #tpu.memory_space<vmem>>, %arg2: memref<1x256x128xbf16, #tpu.memory_space<vmem>>, %arg3: memref<1x128x256xbf16, #tpu.memory_space<vmem>>, %arg4: memref<1x3x256x256xbf16, #tpu.memory_space<vmem>>, %arg5: memref<768x128xbf16, #tpu.memory_space<vmem>>) attributes {dimension_semantics = [#tpu.dimension_semantics<parallel>], iteration_bounds = array<i64: 2>, scalar_prefetch = 0 : i64, scratch_operands = 1 : i64, tpu.core_type = #tpu.core_type<tc>, window_params = [{transform_indices = @transform_0, window_bounds = array<i64: 1, 128, 384>}, {transform_indices = @transform_1, window_bounds = array<i64: 1, 256, 128>}, {transform_indices = @transform_2, window_bounds = array<i64: 1, 128, 256>}, {transform_indices = @transform_3, window_bounds = array<i64: 1, 3, 256, 256>}]} {
    %c0 = arith.constant 0 : index
    %c0_0 = arith.constant 0 : index
    %c0_1 = arith.constant 0 : index
    %0 = vector.load %arg2[%c0, %c0_0, %c0_1] : memref<1x256x128xbf16, #tpu.memory_space<vmem>>, vector<1x256x128xbf16>
    %1 = vector.shape_cast %0 : vector<1x256x128xbf16> to vector<256x128xbf16>
    %c0_2 = arith.constant 0 : index
    %c0_3 = arith.constant 0 : index
    %c0_4 = arith.constant 0 : index
    %2 = vector.load %arg1[%c0_2, %c0_3, %c0_4] : memref<1x128x384xbf16, #tpu.memory_space<vmem>>, vector<1x128x384xbf16>
    %3 = vector.shape_cast %2 : vector<1x128x384xbf16> to vector<128x384xbf16>
    %cst = arith.constant dense<0.000000e+00> : vector<256x384xf32>
    %4 = tpu.matmul %1, %3, %cst {dimension_numbers = #tpu.dot_dimension_numbers<[1], [0], [0], [1], [0, 0, 1, 1], [], []>} : vector<256x128xbf16>, vector<128x384xbf16>, vector<256x384xf32> -> vector<256x384xf32>
    %5 = vector.extract_strided_slice %4 {offsets = [0, 0], sizes = [256, 128], strides = [1, 1]} : vector<256x384xf32> to vector<256x128xf32>
    %6 = arith.truncf %5 : vector<256x128xf32> to vector<256x128xbf16>
    %c0_5 = arith.constant 0 : index
    %c0_6 = arith.constant 0 : index
    %7 = vector.load %arg5[%c0_5, %c0_6] : memref<768x128xbf16, #tpu.memory_space<vmem>>, vector<256x128xbf16>
    tpu.vector_store %arg5[%c0_5, %c0_6], %6 {strides = array<i32>} : memref<768x128xbf16, #tpu.memory_space<vmem>>, vector<256x128xbf16>,
    %8 = vector.extract_strided_slice %4 {offsets = [0, 128], sizes = [256, 128], strides = [1, 1]} : vector<256x384xf32> to vector<256x128xf32>
    %9 = arith.truncf %8 : vector<256x128xf32> to vector<256x128xbf16>
    %c256 = arith.constant 256 : index
    %c0_7 = arith.constant 0 : index
    %10 = vector.load %arg5[%c256, %c0_7] : memref<768x128xbf16, #tpu.memory_space<vmem>>, vector<256x128xbf16>
    tpu.vector_store %arg5[%c256, %c0_7], %9 {strides = array<i32>} : memref<768x128xbf16, #tpu.memory_space<vmem>>, vector<256x128xbf16>,
    %11 = vector.extract_strided_slice %4 {offsets = [0, 256], sizes = [256, 128], strides = [1, 1]} : vector<256x384xf32> to vector<256x128xf32>
    %12 = arith.truncf %11 : vector<256x128xf32> to vector<256x128xbf16>
    %c512 = arith.constant 512 : index
    %c0_8 = arith.constant 0 : index
    %13 = vector.load %arg5[%c512, %c0_8] : memref<768x128xbf16, #tpu.memory_space<vmem>>, vector<256x128xbf16>
    tpu.vector_store %arg5[%c512, %c0_8], %12 {strides = array<i32>} : memref<768x128xbf16, #tpu.memory_space<vmem>>, vector<256x128xbf16>,
    %c0_9 = arith.constant 0 : index
    %c0_10 = arith.constant 0 : index
    %14 = vector.load %arg5[%c0_9, %c0_10] : memref<768x128xbf16, #tpu.memory_space<vmem>>, vector<768x128xbf16>
    %c0_11 = arith.constant 0 : index
    %c0_12 = arith.constant 0 : index
    %c0_13 = arith.constant 0 : index
    %15 = vector.load %arg3[%c0_11, %c0_12, %c0_13] : memref<1x128x256xbf16, #tpu.memory_space<vmem>>, vector<1x128x256xbf16>
    %16 = vector.shape_cast %15 : vector<1x128x256xbf16> to vector<128x256xbf16>
    %cst_14 = arith.constant dense<0.000000e+00> : vector<768x256xf32>
    %17 = tpu.matmul %14, %16, %cst_14 {dimension_numbers = #tpu.dot_dimension_numbers<[1], [0], [0], [1], [0, 0, 1, 1], [], []>} : vector<768x128xbf16>, vector<128x256xbf16>, vector<768x256xf32> -> vector<768x256xf32>
    %18 = vector.extract_strided_slice %17 {offsets = [0, 0], sizes = [256, 256], strides = [1, 1]} : vector<768x256xf32> to vector<256x256xf32>
    %19 = arith.truncf %18 : vector<256x256xf32> to vector<256x256xbf16>
    %c0_15 = arith.constant 0 : index
    %c0_16 = arith.constant 0 : index
    %c0_17 = arith.constant 0 : index
    %c0_18 = arith.constant 0 : index
    %20 = vector.load %arg4[%c0_15, %c0_16, %c0_17, %c0_18] : memref<1x3x256x256xbf16, #tpu.memory_space<vmem>>, vector<1x1x256x256xbf16>
    %21 = vector.shape_cast %20 : vector<1x1x256x256xbf16> to vector<256x256xbf16>
    %22 = vector.shape_cast %19 : vector<256x256xbf16> to vector<1x1x256x256xbf16>
    tpu.vector_store %arg4[%c0_15, %c0_16, %c0_17, %c0_18], %22 {strides = array<i32>} : memref<1x3x256x256xbf16, #tpu.memory_space<vmem>>, vector<1x1x256x256xbf16>,
    %23 = vector.extract_strided_slice %17 {offsets = [256, 0], sizes = [256, 256], strides = [1, 1]} : vector<768x256xf32> to vector<256x256xf32>
    %24 = arith.truncf %23 : vector<256x256xf32> to vector<256x256xbf16>
    %c0_19 = arith.constant 0 : index
    %c1 = arith.constant 1 : index
    %c0_20 = arith.constant 0 : index
    %c0_21 = arith.constant 0 : index
    %25 = vector.load %arg4[%c0_19, %c1, %c0_20, %c0_21] : memref<1x3x256x256xbf16, #tpu.memory_space<vmem>>, vector<1x1x256x256xbf16>
    %26 = vector.shape_cast %25 : vector<1x1x256x256xbf16> to vector<256x256xbf16>
    %27 = vector.shape_cast %24 : vector<256x256xbf16> to vector<1x1x256x256xbf16>
    tpu.vector_store %arg4[%c0_19, %c1, %c0_20, %c0_21], %27 {strides = array<i32>} : memref<1x3x256x256xbf16, #tpu.memory_space<vmem>>, vector<1x1x256x256xbf16>,
    %28 = vector.extract_strided_slice %17 {offsets = [512, 0], sizes = [256, 256], strides = [1, 1]} : vector<768x256xf32> to vector<256x256xf32>
    %29 = arith.truncf %28 : vector<256x256xf32> to vector<256x256xbf16>
    %c0_22 = arith.constant 0 : index
    %c2 = arith.constant 2 : index
    %c0_23 = arith.constant 0 : index
    %c0_24 = arith.constant 0 : index
    %30 = vector.load %arg4[%c0_22, %c2, %c0_23, %c0_24] : memref<1x3x256x256xbf16, #tpu.memory_space<vmem>>, vector<1x1x256x256xbf16>
    %31 = vector.shape_cast %30 : vector<1x1x256x256xbf16> to vector<256x256xbf16>
    %32 = vector.shape_cast %29 : vector<256x256xbf16> to vector<1x1x256x256xbf16>
    tpu.vector_store %arg4[%c0_22, %c2, %c0_23, %c0_24], %32 {strides = array<i32>} : memref<1x3x256x256xbf16, #tpu.memory_space<vmem>>, vector<1x1x256x256xbf16>,
    return
  }
  func.func @transform_0(%arg0: i32) -> (i32, i32, i32) {
    %c0_i32 = arith.constant 0 : i32
    %c0_i32_0 = arith.constant 0 : i32
    %c0_i32_1 = arith.constant 0 : i32
    return %arg0, %c0_i32, %c0_i32_0 : i32, i32, i32
  }
  func.func @transform_1(%arg0: i32) -> (i32, i32, i32) {
    %c0_i32 = arith.constant 0 : i32
    %c0_i32_0 = arith.constant 0 : i32
    %c0_i32_1 = arith.constant 0 : i32
    return %arg0, %c0_i32, %c0_i32_0 : i32, i32, i32
  }
  func.func @transform_2(%arg0: i32) -> (i32, i32, i32) {
    %c0_i32 = arith.constant 0 : i32
    %c0_i32_0 = arith.constant 0 : i32
    %c0_i32_1 = arith.constant 0 : i32
    return %arg0, %c0_i32, %c0_i32_0 : i32, i32, i32
  }
  func.func @transform_3(%arg0: i32) -> (i32, i32, i32, i32) {
    %c0_i32 = arith.constant 0 : i32
    %c0_i32_0 = arith.constant 0 : i32
    %c0_i32_1 = arith.constant 0 : i32
    %c0_i32_2 = arith.constant 0 : i32
    return %arg0, %c0_i32, %c0_i32_0, %c0_i32_1 : i32, i32, i32, i32
  }
}

</mosaic_0001>

<llo_original>
// kernel: tpu_custom_call.1
$region0: #{tpu_custom_call.1}
  #allocation0 [shape = 'u32[]', space=smem, size = 0x4, offset = 0x4, fixed_abs, tag = 'smem constant byte address 0x4 - core index']
  #allocation1 [shape = 'u32[144,128]{1,0:T(1,128)}', space=vmem, size = 0x12000, scoped, tag = 'internal scratch']
  #allocation2 [shape = 'bf16[768,128]{1,0:T(8,128)(2,1)}', space=vmem, size = 0x30000, scoped, tag = 'scratch operand']
  %s0 = inlined_call_operand.hbm [shape: bf16[2,128,384], index: 0, kind: input, shape index: {}]
  %s1 = inlined_call_operand.hbm [shape: bf16[2,256,128], index: 1, kind: input, shape index: {}]
  %s2 = inlined_call_operand.hbm [shape: bf16[2,128,256], index: 2, kind: input, shape index: {}]
  %s3 = inlined_call_operand.hbm [shape: bf16[2,3,256,256], index: 3, kind: output, shape index: {}]
  %s4 = sld [smem:[#allocation0]]
  $region57: #{tpu_custom_call.1} parent=0
    _
  %s6 = ssub.s32 1, %s4
  %s7 = scalar_select 0, %s6, %s4
  $region1: #{tpu_custom_call.1} parent=0
    #allocation3 [shape = 'u8[196608]{0}', space=vmem, size = 0x30000, scoped, tag = 'input window, operand 0']
    #allocation4 [shape = 's32[2]{0}', space=sflag, size = 0x8, scoped, tag = 'scoped memory for tpu_custom_call.1']
    #allocation5 [shape = 's32[2]{0}', space=sflag, size = 0x8, scoped, tag = 'scoped memory for tpu_custom_call.1']
    #allocation6 [shape = 'u8[131072]{0}', space=vmem, size = 0x20000, scoped, tag = 'input window, operand 1']
    #allocation7 [shape = 's32[2]{0}', space=sflag, size = 0x8, scoped, tag = 'scoped memory for tpu_custom_call.1']
    #allocation8 [shape = 'u8[131072]{0}', space=vmem, size = 0x20000, scoped, tag = 'input window, operand 2']
    #allocation9 [shape = 'u8[786432]{0}', space=vmem, size = 0xc0000, scoped, tag = 'output window, operand 0']
    %8 = vsyncpa [#allocation4], 0
    %s9 = scalar_lea.sflag [#allocation4], 1
    %10 = vsyncpa %s9, 0
    %11 = vsyncpa [#allocation7], 0
    %s12 = scalar_lea.sflag [#allocation7], 1
    %13 = vsyncpa %s12, 0
    %14 = vsyncpa [#allocation5], 0
    %s15 = scalar_lea.sflag [#allocation5], 1
    %16 = vsyncpa %s15, 0
    loop: start=0, step=1, limit=4
    $region2: #{tpu_custom_call.1} parent=1 // loop_pre_header
      _
    $region3: #{tpu_custom_call.1} parent=1 // loop_header
      %s18 = sphi 0, %s22
      %p19 = scmp.ge.s32.totalorder %s18, 4
      %s28 = sphi 0, %s30
      %s31 = sphi 0, %s28
      %s32 = sphi 0, %s31
      %s48 = sphi 0, %s32
      %s54 = sphi 0, %s56
      %s57 = sphi 0, %s54
      %s58 = sphi 0, %s57
      %s74 = sphi 0, %s58
      %s80 = sphi 0, %s82
      %s83 = sphi 0, %s80
      %s84 = sphi 0, %s83
      %s100 = sphi 0, %s84
      %s106 = sphi 0, %s108
      %s109 = sphi 0, %s106
      %s110 = sphi 0, %s109
      %s126 = sphi 0, %s110
    $region4: #{tpu_custom_call.1} parent=1 // loop_header_branch
      %21 = sbr.rel (%p19) target = $region8
    $region5: #{tpu_custom_call.1} parent=1 // loop_body
      %s23 = ssub.s32 %s18, 1
      %s24 = ssub.s32 %s18, 2
      %s25 = sadd.s32 %s18, 1
      %s26 = ssub.s32 %s18, %s25
      %p27 = scmp.eq.s32.totalorder %s26, 0
      %s29 = sadd.s32 %s28, 1
      %s30 = scalar_select %p27, %s28, %s29
      %p33 = pneg %p27
      %p34 = scmp.eq.s32.totalorder %s18, 1
      %p35 = por %p33, %p34
      %p36 = scmp.ne.s32.totalorder %s28, %s31
      %p37 = scmp.eq.s32.totalorder %s18, 0
      %p38 = por %p36, %p37
      %p39 = scmp.ne.s32.totalorder %s28, %s31
      %p40 = scmp.eq.s32.totalorder %s23, 1
      %p41 = por %p39, %p40
      %p42 = scmp.ne.s32.totalorder %s31, %s32
      %p43 = scmp.eq.s32.totalorder %s23, 0
      %p44 = por %p42, %p43
      %p45 = scmp.ne.s32.totalorder %s31, %s32
      %p46 = scmp.eq.s32.totalorder %s24, 1
      %p47 = por %p45, %p46
      %p49 = scmp.ne.s32.totalorder %s32, %s48
      %p50 = scmp.eq.s32.totalorder %s24, 0
      %p51 = por %p49, %p50
      %s52 = ssub.s32 %s18, %s25
      %p53 = scmp.eq.s32.totalorder %s52, 0
      %s55 = sadd.s32 %s54, 1
      %s56 = scalar_select %p53, %s54, %s55
      %p59 = pneg %p53
      %p60 = scmp.eq.s32.totalorder %s18, 1
      %p61 = por %p59, %p60
      %p62 = scmp.ne.s32.totalorder %s54, %s57
      %p63 = scmp.eq.s32.totalorder %s18, 0
      %p64 = por %p62, %p63
      %p65 = scmp.ne.s32.totalorder %s54, %s57
      %p66 = scmp.eq.s32.totalorder %s23, 1
      %p67 = por %p65, %p66
      %p68 = scmp.ne.s32.totalorder %s57, %s58
      %p69 = scmp.eq.s32.totalorder %s23, 0
      %p70 = por %p68, %p69
      %p71 = scmp.ne.s32.totalorder %s57, %s58
      %p72 = scmp.eq.s32.totalorder %s24, 1
      %p73 = por %p71, %p72
      %p75 = scmp.ne.s32.totalorder %s58, %s74
      %p76 = scmp.eq.s32.totalorder %s24, 0
      %p77 = por %p75, %p76
      %s78 = ssub.s32 %s18, %s25
      %p79 = scmp.eq.s32.totalorder %s78, 0
      %s81 = sadd.s32 %s80, 1
      %s82 = scalar_select %p79, %s80, %s81
      %p85 = pneg %p79
      %p86 = scmp.eq.s32.totalorder %s18, 1
      %p87 = por %p85, %p86
      %p88 = scmp.ne.s32.totalorder %s80, %s83
      %p89 = scmp.eq.s32.totalorder %s18, 0
      %p90 = por %p88, %p89
      %p91 = scmp.ne.s32.totalorder %s80, %s83
      %p92 = scmp.eq.s32.totalorder %s23, 1
      %p93 = por %p91, %p92
      %p94 = scmp.ne.s32.totalorder %s83, %s84
      %p95 = scmp.eq.s32.totalorder %s23, 0
      %p96 = por %p94, %p95
      %p97 = scmp.ne.s32.totalorder %s83, %s84
      %p98 = scmp.eq.s32.totalorder %s24, 1
      %p99 = por %p97, %p98
      %p101 = scmp.ne.s32.totalorder %s84, %s100
      %p102 = scmp.eq.s32.totalorder %s24, 0
      %p103 = por %p101, %p102
      %s104 = ssub.s32 %s18, %s25
      %p105 = scmp.eq.s32.totalorder %s104, 0
      %s107 = sadd.s32 %s106, 1
      %s108 = scalar_select %p105, %s106, %s107
      %p111 = pneg %p105
      %p112 = scmp.eq.s32.totalorder %s18, 1
      %p113 = por %p111, %p112
      %p114 = scmp.ne.s32.totalorder %s106, %s109
      %p115 = scmp.eq.s32.totalorder %s18, 0
      %p116 = por %p114, %p115
      %p117 = scmp.ne.s32.totalorder %s106, %s109
      %p118 = scmp.eq.s32.totalorder %s23, 1
      %p119 = por %p117, %p118
      %p120 = scmp.ne.s32.totalorder %s109, %s110
      %p121 = scmp.eq.s32.totalorder %s23, 0
      %p122 = por %p120, %p121
      %p123 = scmp.ne.s32.totalorder %s109, %s110
      %p124 = scmp.eq.s32.totalorder %s24, 1
      %p125 = por %p123, %p124
      %p127 = scmp.ne.s32.totalorder %s110, %s126
      %p128 = scmp.eq.s32.totalorder %s24, 0
      %p129 = por %p127, %p128
      %p130 = scmp.le.s32.totalorder 1, %s18
      %p131 = scmp.lt.s32.totalorder %s18, 3
      %p132 = pnand %p130, %p131
      %p133 = pneg %p132
      // Predicated region
      $region9: #{tpu_custom_call.1} parent=5 // pred_check
        _
      $region10: #{tpu_custom_call.1} parent=5 // pred_check_branch
        %135 = sbr.rel (%p132) target = $region12
      $region11: #{tpu_custom_call.1} parent=5 // pred_region
        %s136 = ssub.s32 %s18, 1
      $region12: #{tpu_custom_call.1} parent=5 // pred_fallthru
        _
      %p137 = scmp.lt.s32.totalorder %s18, 2
      // Predicated region
      $region13: #{tpu_custom_call.1} parent=5 // pred_check
        %p138 = pneg %p137
      $region14: #{tpu_custom_call.1} parent=5 // pred_check_branch
        %140 = sbr.rel (%p138) target = $region16
      $region15: #{tpu_custom_call.1} parent=5 // pred_region
        // Predicated region
        $region17: #{tpu_custom_call.1} parent=15 // pred_check
          %p141 = pneg %p38
        $region18: #{tpu_custom_call.1} parent=15 // pred_check_branch
          %143 = sbr.rel (%p141) target = $region20
        $region19: #{tpu_custom_call.1} parent=15 // pred_region
          %s144 = sand.u32 %s28, 1
          %s145 = scalar_lea.sflag [#allocation4], %s144
          %s146 = sand.u32 %s28, 1
          %s147 = smul.addr %s146, 192
          %s148 = scalar_lea.vmem [#allocation3], %s147
          %s150 = ssub.s32 3072, 3072
          %151 = vsyncadd %s145, %s150
          %s152 = smul.addr %s18, 48
          %s153 = smul.addr %s152, 64
          %s154 = scalar_lea.hbm %s0, %s153
          %s155 = sshll.u32 %s148, 4
          %s156 = int_to_ptr.vmem [resolvable:$true] %s155
          %161 = dma.hbm_to_vmem [thread:$0]  %s154, 3072, %s156, %s145, 192, 192, 12
        $region20: #{tpu_custom_call.1} parent=15 // pred_fallthru
          _
        // Predicated region
        $region21: #{tpu_custom_call.1} parent=15 // pred_check
          %p162 = pneg %p64
        $region22: #{tpu_custom_call.1} parent=15 // pred_check_branch
          %164 = sbr.rel (%p162) target = $region24
        $region23: #{tpu_custom_call.1} parent=15 // pred_region
          %s165 = sand.u32 %s18, 1
          %s166 = scalar_lea.sflag [#allocation7], %s165
          %s167 = sand.u32 %s54, 1
          %s168 = smul.addr %s167, 128
          %s169 = scalar_lea.vmem [#allocation6], %s168
          %s171 = ssub.s32 2048, 2048
          %172 = vsyncadd %s166, %s171
          %s173 = smul.addr %s18, 32
          %s174 = smul.addr %s173, 64
          %s175 = scalar_lea.hbm %s1, %s174
          %s176 = sshll.u32 %s169, 4
          %s177 = int_to_ptr.vmem [resolvable:$true] %s176
          %182 = dma.hbm_to_vmem [thread:$0]  %s175, 2048, %s177, %s166, 64, 64, 4
        $region24: #{tpu_custom_call.1} parent=15 // pred_fallthru
          _
        // Predicated region
        $region25: #{tpu_custom_call.1} parent=15 // pred_check
          %p183 = pneg %p90
        $region26: #{tpu_custom_call.1} parent=15 // pred_check_branch
          %185 = sbr.rel (%p183) target = $region28
        $region27: #{tpu_custom_call.1} parent=15 // pred_region
          %s186 = sand.u32 %s18, 1
          %s187 = scalar_lea.sflag [#allocation7], %s186
          %s188 = sand.u32 %s80, 1
          %s189 = smul.addr %s188, 128
          %s190 = scalar_lea.vmem [#allocation8], %s189
          %s192 = ssub.s32 2048, 2048
          %193 = vsyncadd %s187, %s192
          %s194 = smul.addr %s18, 32
          %s195 = smul.addr %s194, 64
          %s196 = scalar_lea.hbm %s2, %s195
          %s197 = sshll.u32 %s190, 4
          %s198 = int_to_ptr.vmem [resolvable:$true] %s197
          %203 = dma.hbm_to_vmem [thread:$0]  %s196, 2048, %s198, %s187, 128, 128, 8
        $region28: #{tpu_custom_call.1} parent=15 // pred_fallthru
          _
      $region16: #{tpu_custom_call.1} parent=5 // pred_fallthru
        _
      %p204 = scmp.le.s32.totalorder 1, %s18
      %p205 = scmp.lt.s32.totalorder %s18, 3
      %p206 = pnand %p204, %p205
      %p207 = pneg %p206
      // Predicated region
      $region29: #{tpu_custom_call.1} parent=5 // pred_check
        _
      $region30: #{tpu_custom_call.1} parent=5 // pred_check_branch
        %209 = sbr.rel (%p206) target = $region32
      $region31: #{tpu_custom_call.1} parent=5 // pred_region
        %s210 = ssub.s32 %s18, 1
        %s211 = sand.u32 %s31, 1
        %s212 = scalar_lea.sflag [#allocation4], %s211
        %s213 = sand.u32 %s31, 1
        %s214 = smul.addr %s213, 192
        %s215 = scalar_lea.vmem [#allocation3], %s214
        // Predicated region
        $region33: #{tpu_custom_call.1} parent=31 // pred_check
          %p216 = pneg %p44
        $region34: #{tpu_custom_call.1} parent=31 // pred_check_branch
          %218 = sbr.rel (%p216) target = $region36
        $region35: #{tpu_custom_call.1} parent=31 // pred_region
          %219 = dma.done %s212, 3072
        $region36: #{tpu_custom_call.1} parent=31 // pred_fallthru
          _
        %s220 = sand.u32 %s23, 1
        %s221 = scalar_lea.sflag [#allocation7], %s220
        %s222 = sand.u32 %s57, 1
        %s223 = smul.addr %s222, 128
        %s224 = scalar_lea.vmem [#allocation6], %s223
        // Predicated region
        $region37: #{tpu_custom_call.1} parent=31 // pred_check
          %p225 = pneg %p70
        $region38: #{tpu_custom_call.1} parent=31 // pred_check_branch
          %227 = sbr.rel (%p225) target = $region40
        $region39: #{tpu_custom_call.1} parent=31 // pred_region
          %228 = dma.done %s221, 2048
        $region40: #{tpu_custom_call.1} parent=31 // pred_fallthru
          _
        %s229 = sand.u32 %s23, 1
        %s230 = scalar_lea.sflag [#allocation7], %s229
        %s231 = sand.u32 %s83, 1
        %s232 = smul.addr %s231, 128
        %s233 = scalar_lea.vmem [#allocation8], %s232
        // Predicated region
        $region41: #{tpu_custom_call.1} parent=31 // pred_check
          %p234 = pneg %p96
        $region42: #{tpu_custom_call.1} parent=31 // pred_check_branch
          %236 = sbr.rel (%p234) target = $region44
        $region43: #{tpu_custom_call.1} parent=31 // pred_region
          %237 = dma.done %s230, 2048
        $region44: #{tpu_custom_call.1} parent=31 // pred_fallthru
          _
        %s238 = sand.u32 %s31, 1
        %s239 = scalar_lea.sflag [#allocation4], %s238
        %s240 = sand.u32 %s31, 1
        %s241 = smul.addr %s240, 192
        %s242 = scalar_lea.vmem [#allocation3], %s241
        %p243 = pneg %p44
        %p244 = pneg %p41
        %s245 = sand.u32 %s23, 1
        %s246 = scalar_lea.sflag [#allocation7], %s245
        %s247 = sand.u32 %s57, 1
        %s248 = smul.addr %s247, 128
        %s249 = scalar_lea.vmem [#allocation6], %s248
        %p250 = pneg %p70
        %p251 = pneg %p67
        %s252 = sand.u32 %s23, 1
        %s253 = scalar_lea.sflag [#allocation7], %s252
        %s254 = sand.u32 %s83, 1
        %s255 = smul.addr %s254, 128
        %s256 = scalar_lea.vmem [#allocation8], %s255
        %p257 = pneg %p96
        %p258 = pneg %p93
        %p259 = pneg %p122
        %p260 = pneg %p119
        %s261 = sand.u32 %s109, 1
        %s262 = scalar_lea.sflag [#allocation5], %s261
        %s263 = sand.u32 %s109, 1
        %s264 = smul.addr %s263, 768
        %s265 = scalar_lea.vmem [#allocation9], %s264
        %v267 = vld [vmem:[%s224] sm:$0xf]
        %v268 = vld [vmem:[%s224 + $0x4] sm:$0xf]
        %v269 = vld [vmem:[%s224 + $0x8] sm:$0xf]
        %v270 = vld [vmem:[%s224 + $0xc] sm:$0xf]
        %v271 = vld [vmem:[%s224 + $0x10] sm:$0xf]
        %v272 = vld [vmem:[%s224 + $0x14] sm:$0xf]
        %v273 = vld [vmem:[%s224 + $0x18] sm:$0xf]
        %v274 = vld [vmem:[%s224 + $0x1c] sm:$0xf]
        %v275 = vld [vmem:[%s224 + $0x20] sm:$0xf]
        %v276 = vld [vmem:[%s224 + $0x24] sm:$0xf]
        %v277 = vld [vmem:[%s224 + $0x28] sm:$0xf]
        %v278 = vld [vmem:[%s224 + $0x2c] sm:$0xf]
        %v279 = vld [vmem:[%s224 + $0x30] sm:$0xf]
        %v280 = vld [vmem:[%s224 + $0x34] sm:$0xf]
        %v281 = vld [vmem:[%s224 + $0x38] sm:$0xf]
        %v282 = vld [vmem:[%s224 + $0x3c] sm:$0xf]
        %v283 = vld [vmem:[%s224 + $0x40] sm:$0xf]
        %v284 = vld [vmem:[%s224 + $0x44] sm:$0xf]
        %v285 = vld [vmem:[%s224 + $0x48] sm:$0xf]
        %v286 = vld [vmem:[%s224 + $0x4c] sm:$0xf]
        %v287 = vld [vmem:[%s224 + $0x50] sm:$0xf]
        %v288 = vld [vmem:[%s224 + $0x54] sm:$0xf]
        %v289 = vld [vmem:[%s224 + $0x58] sm:$0xf]
        %v290 = vld [vmem:[%s224 + $0x5c] sm:$0xf]
        %v291 = vld [vmem:[%s224 + $0x60] sm:$0xf]
        %v292 = vld [vmem:[%s224 + $0x64] sm:$0xf]
        %v293 = vld [vmem:[%s224 + $0x68] sm:$0xf]
        %v294 = vld [vmem:[%s224 + $0x6c] sm:$0xf]
        %v295 = vld [vmem:[%s224 + $0x70] sm:$0xf]
        %v296 = vld [vmem:[%s224 + $0x74] sm:$0xf]
        %v297 = vld [vmem:[%s224 + $0x78] sm:$0xf]
        %v298 = vld [vmem:[%s224 + $0x7c] sm:$0xf]
        %v299 = vld [vmem:[%s215] sm:$0xff]
        %v300 = vld [vmem:[%s215 + $0x8] sm:$0xf]
        %v301 = vld [vmem:[%s215 + $0xc] sm:$0xff]
        %v302 = vld [vmem:[%s215 + $0x14] sm:$0xf]
        %v303 = vld [vmem:[%s215 + $0x18] sm:$0xff]
        %v304 = vld [vmem:[%s215 + $0x20] sm:$0xf]
        %v305 = vld [vmem:[%s215 + $0x24] sm:$0xff]
        %v306 = vld [vmem:[%s215 + $0x2c] sm:$0xf]
        %v307 = vld [vmem:[%s215 + $0x30] sm:$0xff]
        %v308 = vld [vmem:[%s215 + $0x38] sm:$0xf]
        %v309 = vld [vmem:[%s215 + $0x3c] sm:$0xff]
        %v310 = vld [vmem:[%s215 + $0x44] sm:$0xf]
        %v311 = vld [vmem:[%s215 + $0x48] sm:$0xff]
        %v312 = vld [vmem:[%s215 + $0x50] sm:$0xf]
        %v313 = vld [vmem:[%s215 + $0x54] sm:$0xff]
        %v314 = vld [vmem:[%s215 + $0x5c] sm:$0xf]
        %v315 = vld [vmem:[%s215 + $0x60] sm:$0xff]
        %v316 = vld [vmem:[%s215 + $0x68] sm:$0xf]
        %v317 = vld [vmem:[%s215 + $0x6c] sm:$0xff]
        %v318 = vld [vmem:[%s215 + $0x74] sm:$0xf]
        %v319 = vld [vmem:[%s215 + $0x78] sm:$0xff]
        %v320 = vld [vmem:[%s215 + $0x80] sm:$0xf]
        %v321 = vld [vmem:[%s215 + $0x84] sm:$0xff]
        %v322 = vld [vmem:[%s215 + $0x8c] sm:$0xf]
        %v323 = vld [vmem:[%s215 + $0x90] sm:$0xff]
        %v324 = vld [vmem:[%s215 + $0x98] sm:$0xf]
        %v325 = vld [vmem:[%s215 + $0x9c] sm:$0xff]
        %v326 = vld [vmem:[%s215 + $0xa4] sm:$0xf]
        %v327 = vld [vmem:[%s215 + $0xa8] sm:$0xff]
        %v328 = vld [vmem:[%s215 + $0xb0] sm:$0xf]
        %v329 = vld [vmem:[%s215 + $0xb4] sm:$0xff]
        %v330 = vld [vmem:[%s215 + $0xbc] sm:$0xf]
        %v363 = vunpack.c.l.b16 %v267
        %v364 = vunpack.c.l.b16 %v268
        %v365 = vunpack.c.l.b16 %v269
        %v366 = vunpack.c.l.b16 %v270
        %v367 = vunpack.c.l.b16 %v271
        %v368 = vunpack.c.l.b16 %v272
        %v369 = vunpack.c.l.b16 %v273
        %v370 = vunpack.c.l.b16 %v274
        %v371 = vunpack.c.l.b16 %v275
        %v372 = vunpack.c.l.b16 %v276
        %v373 = vunpack.c.l.b16 %v277
        %v374 = vunpack.c.l.b16 %v278
        %v375 = vunpack.c.l.b16 %v279
        %v376 = vunpack.c.l.b16 %v280
        %v377 = vunpack.c.l.b16 %v281
        %v378 = vunpack.c.l.b16 %v282
        %v379 = vunpack.c.l.b16 %v283
        %v380 = vunpack.c.l.b16 %v284
        %v381 = vunpack.c.l.b16 %v285
        %v382 = vunpack.c.l.b16 %v286
        %v383 = vunpack.c.l.b16 %v287
        %v384 = vunpack.c.l.b16 %v288
        %v385 = vunpack.c.l.b16 %v289
        %v386 = vunpack.c.l.b16 %v290
        %v387 = vunpack.c.l.b16 %v291
        %v388 = vunpack.c.l.b16 %v292
        %v389 = vunpack.c.l.b16 %v293
        %v390 = vunpack.c.l.b16 %v294
        %v391 = vunpack.c.l.b16 %v295
        %v392 = vunpack.c.l.b16 %v296
        %v393 = vunpack.c.l.b16 %v297
        %v394 = vunpack.c.l.b16 %v298
        %v395 = vpack.c.b16 %v364, %v363
        %v396 = vpack.c.b16 %v366, %v365
        %v397 = vpack.c.b16 %v368, %v367
        %v398 = vpack.c.b16 %v370, %v369
        %v399 = vpack.c.b16 %v372, %v371
        %v400 = vpack.c.b16 %v374, %v373
        %v401 = vpack.c.b16 %v376, %v375
        %v402 = vpack.c.b16 %v378, %v377
        %v403 = vpack.c.b16 %v380, %v379
        %v404 = vpack.c.b16 %v382, %v381
        %v405 = vpack.c.b16 %v384, %v383
        %v406 = vpack.c.b16 %v386, %v385
        %v407 = vpack.c.b16 %v388, %v387
        %v408 = vpack.c.b16 %v390, %v389
        %v409 = vpack.c.b16 %v392, %v391
        %v410 = vpack.c.b16 %v394, %v393
        %v459 = vunpack.c.l.b16 %v299
        %v460 = vunpack.c.h.b16 %v299
        %v461 = vunpack.c.l.b16 %v300
        %v462 = vunpack.c.l.b16 %v301
        %v463 = vunpack.c.h.b16 %v301
        %v464 = vunpack.c.l.b16 %v302
        %v465 = vunpack.c.l.b16 %v303
        %v466 = vunpack.c.h.b16 %v303
        %v467 = vunpack.c.l.b16 %v304
        %v468 = vunpack.c.l.b16 %v305
        %v469 = vunpack.c.h.b16 %v305
        %v470 = vunpack.c.l.b16 %v306
        %v471 = vunpack.c.l.b16 %v307
        %v472 = vunpack.c.h.b16 %v307
        %v473 = vunpack.c.l.b16 %v308
        %v474 = vunpack.c.l.b16 %v309
        %v475 = vunpack.c.h.b16 %v309
        %v476 = vunpack.c.l.b16 %v310
        %v477 = vunpack.c.l.b16 %v311
        %v478 = vunpack.c.h.b16 %v311
        %v479 = vunpack.c.l.b16 %v312
        %v480 = vunpack.c.l.b16 %v313
        %v481 = vunpack.c.h.b16 %v313
        %v482 = vunpack.c.l.b16 %v314
        %v483 = vunpack.c.l.b16 %v315
        %v484 = vunpack.c.h.b16 %v315
        %v485 = vunpack.c.l.b16 %v316
        %v486 = vunpack.c.l.b16 %v317
        %v487 = vunpack.c.h.b16 %v317
        %v488 = vunpack.c.l.b16 %v318
        %v489 = vunpack.c.l.b16 %v319
        %v490 = vunpack.c.h.b16 %v319
        %v491 = vunpack.c.l.b16 %v320
        %v492 = vunpack.c.l.b16 %v321
        %v493 = vunpack.c.h.b16 %v321
        %v494 = vunpack.c.l.b16 %v322
        %v495 = vunpack.c.l.b16 %v323
        %v496 = vunpack.c.h.b16 %v323
        %v497 = vunpack.c.l.b16 %v324
        %v498 = vunpack.c.l.b16 %v325
        %v499 = vunpack.c.h.b16 %v325
        %v500 = vunpack.c.l.b16 %v326
        %v501 = vunpack.c.l.b16 %v327
        %v502 = vunpack.c.h.b16 %v327
        %v503 = vunpack.c.l.b16 %v328
        %v504 = vunpack.c.l.b16 %v329
        %v505 = vunpack.c.h.b16 %v329
        %v506 = vunpack.c.l.b16 %v330
        %v507 = vpack.c.b16 %v462, %v459
        %v508 = vpack.c.b16 %v463, %v460
        %v509 = vpack.c.b16 %v464, %v461
        %v510 = vpack.c.b16 %v468, %v465
        %v511 = vpack.c.b16 %v469, %v466
        %v512 = vpack.c.b16 %v470, %v467
        %v513 = vpack.c.b16 %v474, %v471
        %v514 = vpack.c.b16 %v475, %v472
        %v515 = vpack.c.b16 %v476, %v473
        %v516 = vpack.c.b16 %v480, %v477
        %v517 = vpack.c.b16 %v481, %v478
        %v518 = vpack.c.b16 %v482, %v479
        %v519 = vpack.c.b16 %v486, %v483
        %v520 = vpack.c.b16 %v487, %v484
        %v521 = vpack.c.b16 %v488, %v485
        %v522 = vpack.c.b16 %v492, %v489
        %v523 = vpack.c.b16 %v493, %v490
        %v524 = vpack.c.b16 %v494, %v491
        %v525 = vpack.c.b16 %v498, %v495
        %v526 = vpack.c.b16 %v499, %v496
        %v527 = vpack.c.b16 %v500, %v497
        %v528 = vpack.c.b16 %v504, %v501
        %v529 = vpack.c.b16 %v505, %v502
        %v530 = vpack.c.b16 %v506, %v503
        %555 = vmatprep.subr.bf16.mxu0 %v529
        %556 = vmatpush1.bf16.msra.mxu0 %v528
        %557 = vmatprep.subr.bf16.mxu0 %v526
        %558 = vmatpush1.bf16.msra.mxu0 %v525
        %559 = vmatprep.subr.bf16.mxu0 %v523
        %560 = vmatpush1.bf16.msra.mxu0 %v522
        %561 = vmatprep.subr.bf16.mxu0 %v520
        %562 = vmatpush1.bf16.msra.mxu0 %v519
        %563 = vmatprep.subr.bf16.mxu0 %v517
        %564 = vmatpush1.bf16.msra.mxu0 %v516
        %565 = vmatprep.subr.bf16.mxu0 %v514
        %566 = vmatpush1.bf16.msra.mxu0 %v513
        %567 = vmatprep.subr.bf16.mxu0 %v511
        %568 = vmatpush1.bf16.msra.mxu0 %v510
        %569 = vmatprep.subr.bf16.mxu0 %v508
        %570 = vmatpush1.bf16.msra.mxu0 %v507
        %571 = vmatprep.subr.bf16.mxu0 0
        %572 = vmatpush2.bf16.msra.mxu0 0
        %573 = vmatprep.subr.bf16.mxu0 0
        %574 = vmatpush2.bf16.msra.mxu0 0
        %575 = vmatprep.subr.bf16.mxu0 0
        %576 = vmatpush2.bf16.msra.mxu0 0
        %577 = vmatprep.subr.bf16.mxu0 0
        %578 = vmatpush2.bf16.msra.mxu0 0
        %579 = vmatprep.subr.bf16.mxu0 0
        %580 = vmatpush2.bf16.msra.mxu0 0
        %581 = vmatprep.subr.bf16.mxu0 0
        %582 = vmatpush2.bf16.msra.mxu0 0
        %583 = vmatprep.subr.bf16.mxu0 0
        %584 = vmatpush2.bf16.msra.mxu0 0
        %585 = vmatprep.subr.bf16.mxu0 0
        %586 = vmatpush2.bf16.msra.mxu0 0
        %587 = vmatprep.mubr.bf16.mxu0 0
        %588 = vmatmul.mubr.bf16.gmra.mxu0 %v395
        %v589 = vpop.f32.mrf.mxu0
        %v590 = vadd.f32 0.0, %v589
        %v591 = vpop.f32.mrf.mxu0
        %v592 = vadd.f32 0.0, %v591
        %v593 = vpop.f32.mrf.mxu0
        %v594 = vadd.f32 0.0, %v593
        %v595 = vpop.f32.mrf.mxu0
        %v596 = vadd.f32 0.0, %v595
        %597 = vmatprep.mubr.bf16.mxu0 0
        %598 = vmatmul.mubr.bf16.gmra.mxu0 %v396
        %v599 = vpop.f32.mrf.mxu0
        %v600 = vadd.f32 0.0, %v599
        %v601 = vpop.f32.mrf.mxu0
        %v602 = vadd.f32 0.0, %v601
        %v603 = vpop.f32.mrf.mxu0
        %v604 = vadd.f32 0.0, %v603
        %v605 = vpop.f32.mrf.mxu0
        %v606 = vadd.f32 0.0, %v605
        %607 = vmatprep.mubr.bf16.mxu0 0
        %608 = vmatmul.mubr.bf16.gmra.mxu0 %v397
        %v609 = vpop.f32.mrf.mxu0
        %v610 = vadd.f32 0.0, %v609
        %v611 = vpop.f32.mrf.mxu0
        %v612 = vadd.f32 0.0, %v611
        %v613 = vpop.f32.mrf.mxu0
        %v614 = vadd.f32 0.0, %v613
        %v615 = vpop.f32.mrf.mxu0
        %v616 = vadd.f32 0.0, %v615
        %617 = vmatprep.mubr.bf16.mxu0 0
        %618 = vmatmul.mubr.bf16.gmra.mxu0 %v398
        %v619 = vpop.f32.mrf.mxu0
        %v620 = vadd.f32 0.0, %v619
        %v621 = vpop.f32.mrf.mxu0
        %v622 = vadd.f32 0.0, %v621
        %v623 = vpop.f32.mrf.mxu0
        %v624 = vadd.f32 0.0, %v623
        %v625 = vpop.f32.mrf.mxu0
        %v626 = vadd.f32 0.0, %v625
        %627 = vmatprep.mubr.bf16.mxu0 0
        %628 = vmatmul.mubr.bf16.gmra.mxu0 %v399
        %v629 = vpop.f32.mrf.mxu0
        %v630 = vadd.f32 0.0, %v629
        %v631 = vpop.f32.mrf.mxu0
        %v632 = vadd.f32 0.0, %v631
        %v633 = vpop.f32.mrf.mxu0
        %v634 = vadd.f32 0.0, %v633
        %v635 = vpop.f32.mrf.mxu0
        %v636 = vadd.f32 0.0, %v635
        %637 = vmatprep.mubr.bf16.mxu0 0
        %638 = vmatmul.mubr.bf16.gmra.mxu0 %v400
        %v639 = vpop.f32.mrf.mxu0
        %v640 = vadd.f32 0.0, %v639
        %v641 = vpop.f32.mrf.mxu0
        %v642 = vadd.f32 0.0, %v641
        %v643 = vpop.f32.mrf.mxu0
        %v644 = vadd.f32 0.0, %v643
        %v645 = vpop.f32.mrf.mxu0
        %v646 = vadd.f32 0.0, %v645
        %647 = vmatprep.mubr.bf16.mxu0 0
        %648 = vmatmul.mubr.bf16.gmra.mxu0 %v401
        %v649 = vpop.f32.mrf.mxu0
        %v650 = vadd.f32 0.0, %v649
        %v651 = vpop.f32.mrf.mxu0
        %v652 = vadd.f32 0.0, %v651
        %v653 = vpop.f32.mrf.mxu0
        %v654 = vadd.f32 0.0, %v653
        %v655 = vpop.f32.mrf.mxu0
        %v656 = vadd.f32 0.0, %v655
        %657 = vmatprep.mubr.bf16.mxu0 0
        %658 = vmatmul.mubr.bf16.gmra.mxu0 %v402
        %v659 = vpop.f32.mrf.mxu0
        %v660 = vadd.f32 0.0, %v659
        %v661 = vpop.f32.mrf.mxu0
        %v662 = vadd.f32 0.0, %v661
        %v663 = vpop.f32.mrf.mxu0
        %v664 = vadd.f32 0.0, %v663
        %v665 = vpop.f32.mrf.mxu0
        %v666 = vadd.f32 0.0, %v665
        %667 = vmatprep.mubr.bf16.mxu0 0
        %668 = vmatmul.mubr.bf16.gmra.mxu0 %v403
        %v669 = vpop.f32.mrf.mxu0
        %v670 = vadd.f32 0.0, %v669
        %v671 = vpop.f32.mrf.mxu0
        %v672 = vadd.f32 0.0, %v671
        %v673 = vpop.f32.mrf.mxu0
        %v674 = vadd.f32 0.0, %v673
        %v675 = vpop.f32.mrf.mxu0
        %v676 = vadd.f32 0.0, %v675
        %677 = vmatprep.mubr.bf16.mxu0 0
        %678 = vmatmul.mubr.bf16.gmra.mxu0 %v404
        %v679 = vpop.f32.mrf.mxu0
        %v680 = vadd.f32 0.0, %v679
        %v681 = vpop.f32.mrf.mxu0
        %v682 = vadd.f32 0.0, %v681
        %v683 = vpop.f32.mrf.mxu0
        %v684 = vadd.f32 0.0, %v683
        %v685 = vpop.f32.mrf.mxu0
        %v686 = vadd.f32 0.0, %v685
        %687 = vmatprep.mubr.bf16.mxu0 0
        %688 = vmatmul.mubr.bf16.gmra.mxu0 %v405
        %v689 = vpop.f32.mrf.mxu0
        %v690 = vadd.f32 0.0, %v689
        %v691 = vpop.f32.mrf.mxu0
        %v692 = vadd.f32 0.0, %v691
        %v693 = vpop.f32.mrf.mxu0
        %v694 = vadd.f32 0.0, %v693
        %v695 = vpop.f32.mrf.mxu0
        %v696 = vadd.f32 0.0, %v695
        %697 = vmatprep.mubr.bf16.mxu0 0
        %698 = vmatmul.mubr.bf16.gmra.mxu0 %v406
        %v699 = vpop.f32.mrf.mxu0
        %v700 = vadd.f32 0.0, %v699
        %v701 = vpop.f32.mrf.mxu0
        %v702 = vadd.f32 0.0, %v701
        %v703 = vpop.f32.mrf.mxu0
        %v704 = vadd.f32 0.0, %v703
        %v705 = vpop.f32.mrf.mxu0
        %v706 = vadd.f32 0.0, %v705
        %707 = vmatprep.mubr.bf16.mxu0 0
        %708 = vmatmul.mubr.bf16.gmra.mxu0 %v407
        %v709 = vpop.f32.mrf.mxu0
        %v710 = vadd.f32 0.0, %v709
        %v711 = vpop.f32.mrf.mxu0
        %v712 = vadd.f32 0.0, %v711
        %v713 = vpop.f32.mrf.mxu0
        %v714 = vadd.f32 0.0, %v713
        %v715 = vpop.f32.mrf.mxu0
        %v716 = vadd.f32 0.0, %v715
        %717 = vmatprep.mubr.bf16.mxu0 0
        %718 = vmatmul.mubr.bf16.gmra.mxu0 %v408
        %v719 = vpop.f32.mrf.mxu0
        %v720 = vadd.f32 0.0, %v719
        %v721 = vpop.f32.mrf.mxu0
        %v722 = vadd.f32 0.0, %v721
        %v723 = vpop.f32.mrf.mxu0
        %v724 = vadd.f32 0.0, %v723
        %v725 = vpop.f32.mrf.mxu0
        %v726 = vadd.f32 0.0, %v725
        %727 = vmatprep.mubr.bf16.mxu0 0
        %728 = vmatmul.mubr.bf16.gmra.mxu0 %v409
        %v729 = vpop.f32.mrf.mxu0
        %v730 = vadd.f32 0.0, %v729
        %v731 = vpop.f32.mrf.mxu0
        %v732 = vadd.f32 0.0, %v731
        %v733 = vpop.f32.mrf.mxu0
        %v734 = vadd.f32 0.0, %v733
        %v735 = vpop.f32.mrf.mxu0
        %v736 = vadd.f32 0.0, %v735
        %737 = vmatprep.mubr.bf16.mxu0 0
        %738 = vmatmul.mubr.bf16.gmra.mxu0 %v410
        %v739 = vpop.f32.mrf.mxu0
        %v740 = vadd.f32 0.0, %v739
        %v741 = vpop.f32.mrf.mxu0
        %v742 = vadd.f32 0.0, %v741
        %v743 = vpop.f32.mrf.mxu0
        %v744 = vadd.f32 0.0, %v743
        %v745 = vpop.f32.mrf.mxu0
        %v746 = vadd.f32 0.0, %v745
        %747 = vdwg.mxu0
        %748 = vmatprep.subr.bf16.mxu0 0
        %749 = vmatpush1.bf16.msra.mxu0 %v530
        %750 = vmatprep.subr.bf16.mxu0 0
        %751 = vmatpush1.bf16.msra.mxu0 %v527
        %752 = vmatprep.subr.bf16.mxu0 0
        %753 = vmatpush1.bf16.msra.mxu0 %v524
        %754 = vmatprep.subr.bf16.mxu0 0
        %755 = vmatpush1.bf16.msra.mxu0 %v521
        %756 = vmatprep.subr.bf16.mxu0 0
        %757 = vmatpush1.bf16.msra.mxu0 %v518
        %758 = vmatprep.subr.bf16.mxu0 0
        %759 = vmatpush1.bf16.msra.mxu0 %v515
        %760 = vmatprep.subr.bf16.mxu0 0
        %761 = vmatpush1.bf16.msra.mxu0 %v512
        %762 = vmatprep.subr.bf16.mxu0 0
        %763 = vmatpush1.bf16.msra.mxu0 %v509
        %764 = vmatprep.subr.bf16.mxu0 0
        %765 = vmatpush2.bf16.msra.mxu0 0
        %766 = vmatprep.subr.bf16.mxu0 0
        %767 = vmatpush2.bf16.msra.mxu0 0
        %768 = vmatprep.subr.bf16.mxu0 0
        %769 = vmatpush2.bf16.msra.mxu0 0
        %770 = vmatprep.subr.bf16.mxu0 0
        %771 = vmatpush2.bf16.msra.mxu0 0
        %772 = vmatprep.subr.bf16.mxu0 0
        %773 = vmatpush2.bf16.msra.mxu0 0
        %774 = vmatprep.subr.bf16.mxu0 0
        %775 = vmatpush2.bf16.msra.mxu0 0
        %776 = vmatprep.subr.bf16.mxu0 0
        %777 = vmatpush2.bf16.msra.mxu0 0
        %778 = vmatprep.subr.bf16.mxu0 0
        %779 = vmatpush2.bf16.msra.mxu0 0
        %780 = vmatprep.mubr.bf16.mxu0 0
        %781 = vmatmul.mubr.bf16.gmra.mxu0 %v395
        %v782 = vpop.f32.mrf.mxu0
        %v783 = vadd.f32 0.0, %v782
        %v784 = vpop.f32.mrf.mxu0
        %v785 = vpop.f32.mrf.mxu0
        %v786 = vadd.f32 0.0, %v785
        %v787 = vpop.f32.mrf.mxu0
        %788 = vmatprep.mubr.bf16.mxu0 0
        %789 = vmatmul.mubr.bf16.gmra.mxu0 %v396
        %v790 = vpop.f32.mrf.mxu0
        %v791 = vadd.f32 0.0, %v790
        %v792 = vpop.f32.mrf.mxu0
        %v793 = vpop.f32.mrf.mxu0
        %v794 = vadd.f32 0.0, %v793
        %v795 = vpop.f32.mrf.mxu0
        %796 = vmatprep.mubr.bf16.mxu0 0
        %797 = vmatmul.mubr.bf16.gmra.mxu0 %v397
        %v798 = vpop.f32.mrf.mxu0
        %v799 = vadd.f32 0.0, %v798
        %v800 = vpop.f32.mrf.mxu0
        %v801 = vpop.f32.mrf.mxu0
        %v802 = vadd.f32 0.0, %v801
        %v803 = vpop.f32.mrf.mxu0
        %804 = vmatprep.mubr.bf16.mxu0 0
        %805 = vmatmul.mubr.bf16.gmra.mxu0 %v398
        %v806 = vpop.f32.mrf.mxu0
        %v807 = vadd.f32 0.0, %v806
        %v808 = vpop.f32.mrf.mxu0
        %v809 = vpop.f32.mrf.mxu0
        %v810 = vadd.f32 0.0, %v809
        %v811 = vpop.f32.mrf.mxu0
        %812 = vmatprep.mubr.bf16.mxu0 0
        %813 = vmatmul.mubr.bf16.gmra.mxu0 %v399
        %v814 = vpop.f32.mrf.mxu0
        %v815 = vadd.f32 0.0, %v814
        %v816 = vpop.f32.mrf.mxu0
        %v817 = vpop.f32.mrf.mxu0
        %v818 = vadd.f32 0.0, %v817
        %v819 = vpop.f32.mrf.mxu0
        %820 = vmatprep.mubr.bf16.mxu0 0
        %821 = vmatmul.mubr.bf16.gmra.mxu0 %v400
        %v822 = vpop.f32.mrf.mxu0
        %v823 = vadd.f32 0.0, %v822
        %v824 = vpop.f32.mrf.mxu0
        %v825 = vpop.f32.mrf.mxu0
        %v826 = vadd.f32 0.0, %v825
        %v827 = vpop.f32.mrf.mxu0
        %828 = vmatprep.mubr.bf16.mxu0 0
        %829 = vmatmul.mubr.bf16.gmra.mxu0 %v401
        %v830 = vpop.f32.mrf.mxu0
        %v831 = vadd.f32 0.0, %v830
        %v832 = vpop.f32.mrf.mxu0
        %v833 = vpop.f32.mrf.mxu0
        %v834 = vadd.f32 0.0, %v833
        %v835 = vpop.f32.mrf.mxu0
        %836 = vmatprep.mubr.bf16.mxu0 0
        %837 = vmatmul.mubr.bf16.gmra.mxu0 %v402
        %v838 = vpop.f32.mrf.mxu0
        %v839 = vadd.f32 0.0, %v838
        %v840 = vpop.f32.mrf.mxu0
        %v841 = vpop.f32.mrf.mxu0
        %v842 = vadd.f32 0.0, %v841
        %v843 = vpop.f32.mrf.mxu0
        %844 = vmatprep.mubr.bf16.mxu0 0
        %845 = vmatmul.mubr.bf16.gmra.mxu0 %v403
        %v846 = vpop.f32.mrf.mxu0
        %v847 = vadd.f32 0.0, %v846
        %v848 = vpop.f32.mrf.mxu0
        %v849 = vpop.f32.mrf.mxu0
        %v850 = vadd.f32 0.0, %v849
        %v851 = vpop.f32.mrf.mxu0
        %852 = vmatprep.mubr.bf16.mxu0 0
        %853 = vmatmul.mubr.bf16.gmra.mxu0 %v404
        %v854 = vpop.f32.mrf.mxu0
        %v855 = vadd.f32 0.0, %v854
        %v856 = vpop.f32.mrf.mxu0
        %v857 = vpop.f32.mrf.mxu0
        %v858 = vadd.f32 0.0, %v857
        %v859 = vpop.f32.mrf.mxu0
        %860 = vmatprep.mubr.bf16.mxu0 0
        %861 = vmatmul.mubr.bf16.gmra.mxu0 %v405
        %v862 = vpop.f32.mrf.mxu0
        %v863 = vadd.f32 0.0, %v862
        %v864 = vpop.f32.mrf.mxu0
        %v865 = vpop.f32.mrf.mxu0
        %v866 = vadd.f32 0.0, %v865
        %v867 = vpop.f32.mrf.mxu0
        %868 = vmatprep.mubr.bf16.mxu0 0
        %869 = vmatmul.mubr.bf16.gmra.mxu0 %v406
        %v870 = vpop.f32.mrf.mxu0
        %v871 = vadd.f32 0.0, %v870
        %v872 = vpop.f32.mrf.mxu0
        %v873 = vpop.f32.mrf.mxu0
        %v874 = vadd.f32 0.0, %v873
        %v875 = vpop.f32.mrf.mxu0
        %876 = vmatprep.mubr.bf16.mxu0 0
        %877 = vmatmul.mubr.bf16.gmra.mxu0 %v407
        %v878 = vpop.f32.mrf.mxu0
        %v879 = vadd.f32 0.0, %v878
        %v880 = vpop.f32.mrf.mxu0
        %v881 = vpop.f32.mrf.mxu0
        %v882 = vadd.f32 0.0, %v881
        %v883 = vpop.f32.mrf.mxu0
        %884 = vmatprep.mubr.bf16.mxu0 0
        %885 = vmatmul.mubr.bf16.gmra.mxu0 %v408
        %v886 = vpop.f32.mrf.mxu0
        %v887 = vadd.f32 0.0, %v886
        %v888 = vpop.f32.mrf.mxu0
        %v889 = vpop.f32.mrf.mxu0
        %v890 = vadd.f32 0.0, %v889
        %v891 = vpop.f32.mrf.mxu0
        %892 = vmatprep.mubr.bf16.mxu0 0
        %893 = vmatmul.mubr.bf16.gmra.mxu0 %v409
        %v894 = vpop.f32.mrf.mxu0
        %v895 = vadd.f32 0.0, %v894
        %v896 = vpop.f32.mrf.mxu0
        %v897 = vpop.f32.mrf.mxu0
        %v898 = vadd.f32 0.0, %v897
        %v899 = vpop.f32.mrf.mxu0
        %900 = vmatprep.mubr.bf16.mxu0 0
        %901 = vmatmul.mubr.bf16.gmra.mxu0 %v410
        %v902 = vpop.f32.mrf.mxu0
        %v903 = vadd.f32 0.0, %v902
        %v904 = vpop.f32.mrf.mxu0
        %v905 = vpop.f32.mrf.mxu0
        %v906 = vadd.f32 0.0, %v905
        %v907 = vpop.f32.mrf.mxu0
        %908 = vdwg.mxu0
        %v909 = vpack.c.bf16 %v594, %v590
        %v910 = vpack.c.bf16 %v604, %v600
        %v911 = vpack.c.bf16 %v614, %v610
        %v912 = vpack.c.bf16 %v624, %v620
        %v913 = vpack.c.bf16 %v634, %v630
        %v914 = vpack.c.bf16 %v644, %v640
        %v915 = vpack.c.bf16 %v654, %v650
        %v916 = vpack.c.bf16 %v664, %v660
        %v917 = vpack.c.bf16 %v674, %v670
        %v918 = vpack.c.bf16 %v684, %v680
        %v919 = vpack.c.bf16 %v694, %v690
        %v920 = vpack.c.bf16 %v704, %v700
        %v921 = vpack.c.bf16 %v714, %v710
        %v922 = vpack.c.bf16 %v724, %v720
        %v923 = vpack.c.bf16 %v734, %v730
        %v924 = vpack.c.bf16 %v744, %v740
        %v941 = vunpack.c.l.b16 %v909
        %v942 = vunpack.c.h.b16 %v909
        %v943 = vunpack.c.l.b16 %v910
        %v944 = vunpack.c.h.b16 %v910
        %v945 = vunpack.c.l.b16 %v911
        %v946 = vunpack.c.h.b16 %v911
        %v947 = vunpack.c.l.b16 %v912
        %v948 = vunpack.c.h.b16 %v912
        %v949 = vunpack.c.l.b16 %v913
        %v950 = vunpack.c.h.b16 %v913
        %v951 = vunpack.c.l.b16 %v914
        %v952 = vunpack.c.h.b16 %v914
        %v953 = vunpack.c.l.b16 %v915
        %v954 = vunpack.c.h.b16 %v915
        %v955 = vunpack.c.l.b16 %v916
        %v956 = vunpack.c.h.b16 %v916
        %v957 = vunpack.c.l.b16 %v917
        %v958 = vunpack.c.h.b16 %v917
        %v959 = vunpack.c.l.b16 %v918
        %v960 = vunpack.c.h.b16 %v918
        %v961 = vunpack.c.l.b16 %v919
        %v962 = vunpack.c.h.b16 %v919
        %v963 = vunpack.c.l.b16 %v920
        %v964 = vunpack.c.h.b16 %v920
        %v965 = vunpack.c.l.b16 %v921
        %v966 = vunpack.c.h.b16 %v921
        %v967 = vunpack.c.l.b16 %v922
        %v968 = vunpack.c.h.b16 %v922
        %v969 = vunpack.c.l.b16 %v923
        %v970 = vunpack.c.h.b16 %v923
        %v971 = vunpack.c.l.b16 %v924
        %v972 = vunpack.c.h.b16 %v924
        %v973 = vpack.c.b16 %v941, %v941
        %v974 = vpack.c.b16 %v942, %v942
        %v975 = vpack.c.b16 %v943, %v943
        %v976 = vpack.c.b16 %v944, %v944
        %v977 = vpack.c.b16 %v945, %v945
        %v978 = vpack.c.b16 %v946, %v946
        %v979 = vpack.c.b16 %v947, %v947
        %v980 = vpack.c.b16 %v948, %v948
        %v981 = vpack.c.b16 %v949, %v949
        %v982 = vpack.c.b16 %v950, %v950
        %v983 = vpack.c.b16 %v951, %v951
        %v984 = vpack.c.b16 %v952, %v952
        %v985 = vpack.c.b16 %v953, %v953
        %v986 = vpack.c.b16 %v954, %v954
        %v987 = vpack.c.b16 %v955, %v955
        %v988 = vpack.c.b16 %v956, %v956
        %v989 = vpack.c.b16 %v957, %v957
        %v990 = vpack.c.b16 %v958, %v958
        %v991 = vpack.c.b16 %v959, %v959
        %v992 = vpack.c.b16 %v960, %v960
        %v993 = vpack.c.b16 %v961, %v961
        %v994 = vpack.c.b16 %v962, %v962
        %v995 = vpack.c.b16 %v963, %v963
        %v996 = vpack.c.b16 %v964, %v964
        %v997 = vpack.c.b16 %v965, %v965
        %v998 = vpack.c.b16 %v966, %v966
        %v999 = vpack.c.b16 %v967, %v967
        %v1000 = vpack.c.b16 %v968, %v968
        %v1001 = vpack.c.b16 %v969, %v969
        %v1002 = vpack.c.b16 %v970, %v970
        %v1003 = vpack.c.b16 %v971, %v971
        %v1004 = vpack.c.b16 %v972, %v972
        %1037 = vst [vmem:[#allocation2] sm:$0xf] %v973
        %1038 = vst [vmem:[#allocation2 + $0x4] sm:$0xf] %v974
        %1039 = vst [vmem:[#allocation2 + $0x8] sm:$0xf] %v975
        %1040 = vst [vmem:[#allocation2 + $0xc] sm:$0xf] %v976
        %1041 = vst [vmem:[#allocation2 + $0x10] sm:$0xf] %v977
        %1042 = vst [vmem:[#allocation2 + $0x14] sm:$0xf] %v978
        %1043 = vst [vmem:[#allocation2 + $0x18] sm:$0xf] %v979
        %1044 = vst [vmem:[#allocation2 + $0x1c] sm:$0xf] %v980
        %1045 = vst [vmem:[#allocation2 + $0x20] sm:$0xf] %v981
        %1046 = vst [vmem:[#allocation2 + $0x24] sm:$0xf] %v982
        %1047 = vst [vmem:[#allocation2 + $0x28] sm:$0xf] %v983
        %1048 = vst [vmem:[#allocation2 + $0x2c] sm:$0xf] %v984
        %1049 = vst [vmem:[#allocation2 + $0x30] sm:$0xf] %v985
        %1050 = vst [vmem:[#allocation2 + $0x34] sm:$0xf] %v986
        %1051 = vst [vmem:[#allocation2 + $0x38] sm:$0xf] %v987
        %1052 = vst [vmem:[#allocation2 + $0x3c] sm:$0xf] %v988
        %1053 = vst [vmem:[#allocation2 + $0x40] sm:$0xf] %v989
        %1054 = vst [vmem:[#allocation2 + $0x44] sm:$0xf] %v990
        %1055 = vst [vmem:[#allocation2 + $0x48] sm:$0xf] %v991
        %1056 = vst [vmem:[#allocation2 + $0x4c] sm:$0xf] %v992
        %1057 = vst [vmem:[#allocation2 + $0x50] sm:$0xf] %v993
        %1058 = vst [vmem:[#allocation2 + $0x54] sm:$0xf] %v994
        %1059 = vst [vmem:[#allocation2 + $0x58] sm:$0xf] %v995
        %1060 = vst [vmem:[#allocation2 + $0x5c] sm:$0xf] %v996
        %1061 = vst [vmem:[#allocation2 + $0x60] sm:$0xf] %v997
        %1062 = vst [vmem:[#allocation2 + $0x64] sm:$0xf] %v998
        %1063 = vst [vmem:[#allocation2 + $0x68] sm:$0xf] %v999
        %1064 = vst [vmem:[#allocation2 + $0x6c] sm:$0xf] %v1000
        %1065 = vst [vmem:[#allocation2 + $0x70] sm:$0xf] %v1001
        %1066 = vst [vmem:[#allocation2 + $0x74] sm:$0xf] %v1002
        %1067 = vst [vmem:[#allocation2 + $0x78] sm:$0xf] %v1003
        %1068 = vst [vmem:[#allocation2 + $0x7c] sm:$0xf] %v1004
        %v1069 = vpack.c.bf16 %v596, %v592
        %v1070 = vpack.c.bf16 %v606, %v602
        %v1071 = vpack.c.bf16 %v616, %v612
        %v1072 = vpack.c.bf16 %v626, %v622
        %v1073 = vpack.c.bf16 %v636, %v632
        %v1074 = vpack.c.bf16 %v646, %v642
        %v1075 = vpack.c.bf16 %v656, %v652
        %v1076 = vpack.c.bf16 %v666, %v662
        %v1077 = vpack.c.bf16 %v676, %v672
        %v1078 = vpack.c.bf16 %v686, %v682
        %v1079 = vpack.c.bf16 %v696, %v692
        %v1080 = vpack.c.bf16 %v706, %v702
        %v1081 = vpack.c.bf16 %v716, %v712
        %v1082 = vpack.c.bf16 %v726, %v722
        %v1083 = vpack.c.bf16 %v736, %v732
        %v1084 = vpack.c.bf16 %v746, %v742
        %v1101 = vunpack.c.l.b16 %v1069
        %v1102 = vunpack.c.h.b16 %v1069
        %v1103 = vunpack.c.l.b16 %v1070
        %v1104 = vunpack.c.h.b16 %v1070
        %v1105 = vunpack.c.l.b16 %v1071
        %v1106 = vunpack.c.h.b16 %v1071
        %v1107 = vunpack.c.l.b16 %v1072
        %v1108 = vunpack.c.h.b16 %v1072
        %v1109 = vunpack.c.l.b16 %v1073
        %v1110 = vunpack.c.h.b16 %v1073
        %v1111 = vunpack.c.l.b16 %v1074
        %v1112 = vunpack.c.h.b16 %v1074
        %v1113 = vunpack.c.l.b16 %v1075
        %v1114 = vunpack.c.h.b16 %v1075
        %v1115 = vunpack.c.l.b16 %v1076
        %v1116 = vunpack.c.h.b16 %v1076
        %v1117 = vunpack.c.l.b16 %v1077
        %v1118 = vunpack.c.h.b16 %v1077
        %v1119 = vunpack.c.l.b16 %v1078
        %v1120 = vunpack.c.h.b16 %v1078
        %v1121 = vunpack.c.l.b16 %v1079
        %v1122 = vunpack.c.h.b16 %v1079
        %v1123 = vunpack.c.l.b16 %v1080
        %v1124 = vunpack.c.h.b16 %v1080
        %v1125 = vunpack.c.l.b16 %v1081
        %v1126 = vunpack.c.h.b16 %v1081
        %v1127 = vunpack.c.l.b16 %v1082
        %v1128 = vunpack.c.h.b16 %v1082
        %v1129 = vunpack.c.l.b16 %v1083
        %v1130 = vunpack.c.h.b16 %v1083
        %v1131 = vunpack.c.l.b16 %v1084
        %v1132 = vunpack.c.h.b16 %v1084
        %v1133 = vpack.c.b16 %v1101, %v1101
        %v1134 = vpack.c.b16 %v1102, %v1102
        %v1135 = vpack.c.b16 %v1103, %v1103
        %v1136 = vpack.c.b16 %v1104, %v1104
        %v1137 = vpack.c.b16 %v1105, %v1105
        %v1138 = vpack.c.b16 %v1106, %v1106
        %v1139 = vpack.c.b16 %v1107, %v1107
        %v1140 = vpack.c.b16 %v1108, %v1108
        %v1141 = vpack.c.b16 %v1109, %v1109
        %v1142 = vpack.c.b16 %v1110, %v1110
        %v1143 = vpack.c.b16 %v1111, %v1111
        %v1144 = vpack.c.b16 %v1112, %v1112
        %v1145 = vpack.c.b16 %v1113, %v1113
        %v1146 = vpack.c.b16 %v1114, %v1114
        %v1147 = vpack.c.b16 %v1115, %v1115
        %v1148 = vpack.c.b16 %v1116, %v1116
        %v1149 = vpack.c.b16 %v1117, %v1117
        %v1150 = vpack.c.b16 %v1118, %v1118
        %v1151 = vpack.c.b16 %v1119, %v1119
        %v1152 = vpack.c.b16 %v1120, %v1120
        %v1153 = vpack.c.b16 %v1121, %v1121
        %v1154 = vpack.c.b16 %v1122, %v1122
        %v1155 = vpack.c.b16 %v1123, %v1123
        %v1156 = vpack.c.b16 %v1124, %v1124
        %v1157 = vpack.c.b16 %v1125, %v1125
        %v1158 = vpack.c.b16 %v1126, %v1126
        %v1159 = vpack.c.b16 %v1127, %v1127
        %v1160 = vpack.c.b16 %v1128, %v1128
        %v1161 = vpack.c.b16 %v1129, %v1129
        %v1162 = vpack.c.b16 %v1130, %v1130
        %v1163 = vpack.c.b16 %v1131, %v1131
        %v1164 = vpack.c.b16 %v1132, %v1132
        %1197 = vst [vmem:[#allocation2 + $0x80] sm:$0xf] %v1133
        %1198 = vst [vmem:[#allocation2 + $0x84] sm:$0xf] %v1134
        %1199 = vst [vmem:[#allocation2 + $0x88] sm:$0xf] %v1135
        %1200 = vst [vmem:[#allocation2 + $0x8c] sm:$0xf] %v1136
        %1201 = vst [vmem:[#allocation2 + $0x90] sm:$0xf] %v1137
        %1202 = vst [vmem:[#allocation2 + $0x94] sm:$0xf] %v1138
        %1203 = vst [vmem:[#allocation2 + $0x98] sm:$0xf] %v1139
        %1204 = vst [vmem:[#allocation2 + $0x9c] sm:$0xf] %v1140
        %1205 = vst [vmem:[#allocation2 + $0xa0] sm:$0xf] %v1141
        %1206 = vst [vmem:[#allocation2 + $0xa4] sm:$0xf] %v1142
        %1207 = vst [vmem:[#allocation2 + $0xa8] sm:$0xf] %v1143
        %1208 = vst [vmem:[#allocation2 + $0xac] sm:$0xf] %v1144
        %1209 = vst [vmem:[#allocation2 + $0xb0] sm:$0xf] %v1145
        %1210 = vst [vmem:[#allocation2 + $0xb4] sm:$0xf] %v1146
        %1211 = vst [vmem:[#allocation2 + $0xb8] sm:$0xf] %v1147
        %1212 = vst [vmem:[#allocation2 + $0xbc] sm:$0xf] %v1148
        %1213 = vst [vmem:[#allocation2 + $0xc0] sm:$0xf] %v1149
        %1214 = vst [vmem:[#allocation2 + $0xc4] sm:$0xf] %v1150
        %1215 = vst [vmem:[#allocation2 + $0xc8] sm:$0xf] %v1151
        %1216 = vst [vmem:[#allocation2 + $0xcc] sm:$0xf] %v1152
        %1217 = vst [vmem:[#allocation2 + $0xd0] sm:$0xf] %v1153
        %1218 = vst [vmem:[#allocation2 + $0xd4] sm:$0xf] %v1154
        %1219 = vst [vmem:[#allocation2 + $0xd8] sm:$0xf] %v1155
        %1220 = vst [vmem:[#allocation2 + $0xdc] sm:$0xf] %v1156
        %1221 = vst [vmem:[#allocation2 + $0xe0] sm:$0xf] %v1157
        %1222 = vst [vmem:[#allocation2 + $0xe4] sm:$0xf] %v1158
        %1223 = vst [vmem:[#allocation2 + $0xe8] sm:$0xf] %v1159
        %1224 = vst [vmem:[#allocation2 + $0xec] sm:$0xf] %v1160
        %1225 = vst [vmem:[#allocation2 + $0xf0] sm:$0xf] %v1161
        %1226 = vst [vmem:[#allocation2 + $0xf4] sm:$0xf] %v1162
        %1227 = vst [vmem:[#allocation2 + $0xf8] sm:$0xf] %v1163
        %1228 = vst [vmem:[#allocation2 + $0xfc] sm:$0xf] %v1164
        %v1229 = vpack.c.bf16 %v786, %v783
        %v1230 = vpack.c.bf16 %v794, %v791
        %v1231 = vpack.c.bf16 %v802, %v799
        %v1232 = vpack.c.bf16 %v810, %v807
        %v1233 = vpack.c.bf16 %v818, %v815
        %v1234 = vpack.c.bf16 %v826, %v823
        %v1235 = vpack.c.bf16 %v834, %v831
        %v1236 = vpack.c.bf16 %v842, %v839
        %v1237 = vpack.c.bf16 %v850, %v847
        %v1238 = vpack.c.bf16 %v858, %v855
        %v1239 = vpack.c.bf16 %v866, %v863
        %v1240 = vpack.c.bf16 %v874, %v871
        %v1241 = vpack.c.bf16 %v882, %v879
        %v1242 = vpack.c.bf16 %v890, %v887
        %v1243 = vpack.c.bf16 %v898, %v895
        %v1244 = vpack.c.bf16 %v906, %v903
        %v1261 = vunpack.c.l.b16 %v1229
        %v1262 = vunpack.c.h.b16 %v1229
        %v1263 = vunpack.c.l.b16 %v1230
        %v1264 = vunpack.c.h.b16 %v1230
        %v1265 = vunpack.c.l.b16 %v1231
        %v1266 = vunpack.c.h.b16 %v1231
        %v1267 = vunpack.c.l.b16 %v1232
        %v1268 = vunpack.c.h.b16 %v1232
        %v1269 = vunpack.c.l.b16 %v1233
        %v1270 = vunpack.c.h.b16 %v1233
        %v1271 = vunpack.c.l.b16 %v1234
        %v1272 = vunpack.c.h.b16 %v1234
        %v1273 = vunpack.c.l.b16 %v1235
        %v1274 = vunpack.c.h.b16 %v1235
        %v1275 = vunpack.c.l.b16 %v1236
        %v1276 = vunpack.c.h.b16 %v1236
        %v1277 = vunpack.c.l.b16 %v1237
        %v1278 = vunpack.c.h.b16 %v1237
        %v1279 = vunpack.c.l.b16 %v1238
        %v1280 = vunpack.c.h.b16 %v1238
        %v1281 = vunpack.c.l.b16 %v1239
        %v1282 = vunpack.c.h.b16 %v1239
        %v1283 = vunpack.c.l.b16 %v1240
        %v1284 = vunpack.c.h.b16 %v1240
        %v1285 = vunpack.c.l.b16 %v1241
        %v1286 = vunpack.c.h.b16 %v1241
        %v1287 = vunpack.c.l.b16 %v1242
        %v1288 = vunpack.c.h.b16 %v1242
        %v1289 = vunpack.c.l.b16 %v1243
        %v1290 = vunpack.c.h.b16 %v1243
        %v1291 = vunpack.c.l.b16 %v1244
        %v1292 = vunpack.c.h.b16 %v1244
        %v1293 = vpack.c.b16 %v1261, %v1261
        %v1294 = vpack.c.b16 %v1262, %v1262
        %v1295 = vpack.c.b16 %v1263, %v1263
        %v1296 = vpack.c.b16 %v1264, %v1264
        %v1297 = vpack.c.b16 %v1265, %v1265
        %v1298 = vpack.c.b16 %v1266, %v1266
        %v1299 = vpack.c.b16 %v1267, %v1267
        %v1300 = vpack.c.b16 %v1268, %v1268
        %v1301 = vpack.c.b16 %v1269, %v1269
        %v1302 = vpack.c.b16 %v1270, %v1270
        %v1303 = vpack.c.b16 %v1271, %v1271
        %v1304 = vpack.c.b16 %v1272, %v1272
        %v1305 = vpack.c.b16 %v1273, %v1273
        %v1306 = vpack.c.b16 %v1274, %v1274
        %v1307 = vpack.c.b16 %v1275, %v1275
        %v1308 = vpack.c.b16 %v1276, %v1276
        %v1309 = vpack.c.b16 %v1277, %v1277
        %v1310 = vpack.c.b16 %v1278, %v1278
        %v1311 = vpack.c.b16 %v1279, %v1279
        %v1312 = vpack.c.b16 %v1280, %v1280
        %v1313 = vpack.c.b16 %v1281, %v1281
        %v1314 = vpack.c.b16 %v1282, %v1282
        %v1315 = vpack.c.b16 %v1283, %v1283
        %v1316 = vpack.c.b16 %v1284, %v1284
        %v1317 = vpack.c.b16 %v1285, %v1285
        %v1318 = vpack.c.b16 %v1286, %v1286
        %v1319 = vpack.c.b16 %v1287, %v1287
        %v1320 = vpack.c.b16 %v1288, %v1288
        %v1321 = vpack.c.b16 %v1289, %v1289
        %v1322 = vpack.c.b16 %v1290, %v1290
        %v1323 = vpack.c.b16 %v1291, %v1291
        %v1324 = vpack.c.b16 %v1292, %v1292
        %1357 = vst [vmem:[#allocation2 + $0x100] sm:$0xf] %v1293
        %1358 = vst [vmem:[#allocation2 + $0x104] sm:$0xf] %v1294
        %1359 = vst [vmem:[#allocation2 + $0x108] sm:$0xf] %v1295
        %1360 = vst [vmem:[#allocation2 + $0x10c] sm:$0xf] %v1296
        %1361 = vst [vmem:[#allocation2 + $0x110] sm:$0xf] %v1297
        %1362 = vst [vmem:[#allocation2 + $0x114] sm:$0xf] %v1298
        %1363 = vst [vmem:[#allocation2 + $0x118] sm:$0xf] %v1299
        %1364 = vst [vmem:[#allocation2 + $0x11c] sm:$0xf] %v1300
        %1365 = vst [vmem:[#allocation2 + $0x120] sm:$0xf] %v1301
        %1366 = vst [vmem:[#allocation2 + $0x124] sm:$0xf] %v1302
        %1367 = vst [vmem:[#allocation2 + $0x128] sm:$0xf] %v1303
        %1368 = vst [vmem:[#allocation2 + $0x12c] sm:$0xf] %v1304
        %1369 = vst [vmem:[#allocation2 + $0x130] sm:$0xf] %v1305
        %1370 = vst [vmem:[#allocation2 + $0x134] sm:$0xf] %v1306
        %1371 = vst [vmem:[#allocation2 + $0x138] sm:$0xf] %v1307
        %1372 = vst [vmem:[#allocation2 + $0x13c] sm:$0xf] %v1308
        %1373 = vst [vmem:[#allocation2 + $0x140] sm:$0xf] %v1309
        %1374 = vst [vmem:[#allocation2 + $0x144] sm:$0xf] %v1310
        %1375 = vst [vmem:[#allocation2 + $0x148] sm:$0xf] %v1311
        %1376 = vst [vmem:[#allocation2 + $0x14c] sm:$0xf] %v1312
        %1377 = vst [vmem:[#allocation2 + $0x150] sm:$0xf] %v1313
        %1378 = vst [vmem:[#allocation2 + $0x154] sm:$0xf] %v1314
        %1379 = vst [vmem:[#allocation2 + $0x158] sm:$0xf] %v1315
        %1380 = vst [vmem:[#allocation2 + $0x15c] sm:$0xf] %v1316
        %1381 = vst [vmem:[#allocation2 + $0x160] sm:$0xf] %v1317
        %1382 = vst [vmem:[#allocation2 + $0x164] sm:$0xf] %v1318
        %1383 = vst [vmem:[#allocation2 + $0x168] sm:$0xf] %v1319
        %1384 = vst [vmem:[#allocation2 + $0x16c] sm:$0xf] %v1320
        %1385 = vst [vmem:[#allocation2 + $0x170] sm:$0xf] %v1321
        %1386 = vst [vmem:[#allocation2 + $0x174] sm:$0xf] %v1322
        %1387 = vst [vmem:[#allocation2 + $0x178] sm:$0xf] %v1323
        %1388 = vst [vmem:[#allocation2 + $0x17c] sm:$0xf] %v1324
        %v1389 = vld [vmem:[#allocation2] sm:$0xf]
        %v1390 = vld [vmem:[#allocation2 + $0x4] sm:$0xf]
        %v1391 = vld [vmem:[#allocation2 + $0x8] sm:$0xf]
        %v1392 = vld [vmem:[#allocation2 + $0xc] sm:$0xf]
        %v1393 = vld [vmem:[#allocation2 + $0x10] sm:$0xf]
        %v1394 = vld [vmem:[#allocation2 + $0x14] sm:$0xf]
        %v1395 = vld [vmem:[#allocation2 + $0x18] sm:$0xf]
        %v1396 = vld [vmem:[#allocation2 + $0x1c] sm:$0xf]
        %v1397 = vld [vmem:[#allocation2 + $0x20] sm:$0xf]
        %v1398 = vld [vmem:[#allocation2 + $0x24] sm:$0xf]
        %v1399 = vld [vmem:[#allocation2 + $0x28] sm:$0xf]
        %v1400 = vld [vmem:[#allocation2 + $0x2c] sm:$0xf]
        %v1401 = vld [vmem:[#allocation2 + $0x30] sm:$0xf]
        %v1402 = vld [vmem:[#allocation2 + $0x34] sm:$0xf]
        %v1403 = vld [vmem:[#allocation2 + $0x38] sm:$0xf]
        %v1404 = vld [vmem:[#allocation2 + $0x3c] sm:$0xf]
        %v1405 = vld [vmem:[#allocation2 + $0x40] sm:$0xf]
        %v1406 = vld [vmem:[#allocation2 + $0x44] sm:$0xf]
        %v1407 = vld [vmem:[#allocation2 + $0x48] sm:$0xf]
        %v1408 = vld [vmem:[#allocation2 + $0x4c] sm:$0xf]
        %v1409 = vld [vmem:[#allocation2 + $0x50] sm:$0xf]
        %v1410 = vld [vmem:[#allocation2 + $0x54] sm:$0xf]
        %v1411 = vld [vmem:[#allocation2 + $0x58] sm:$0xf]
        %v1412 = vld [vmem:[#allocation2 + $0x5c] sm:$0xf]
        %v1413 = vld [vmem:[#allocation2 + $0x60] sm:$0xf]
        %v1414 = vld [vmem:[#allocation2 + $0x64] sm:$0xf]
        %v1415 = vld [vmem:[#allocation2 + $0x68] sm:$0xf]
        %v1416 = vld [vmem:[#allocation2 + $0x6c] sm:$0xf]
        %v1417 = vld [vmem:[#allocation2 + $0x70] sm:$0xf]
        %v1418 = vld [vmem:[#allocation2 + $0x74] sm:$0xf]
        %v1419 = vld [vmem:[#allocation2 + $0x78] sm:$0xf]
        %v1420 = vld [vmem:[#allocation2 + $0x7c] sm:$0xf]
        %v1421 = vld [vmem:[#allocation2 + $0x80] sm:$0xf]
        %v1422 = vld [vmem:[#allocation2 + $0x84] sm:$0xf]
        %v1423 = vld [vmem:[#allocation2 + $0x88] sm:$0xf]
        %v1424 = vld [vmem:[#allocation2 + $0x8c] sm:$0xf]
        %v1425 = vld [vmem:[#allocation2 + $0x90] sm:$0xf]
        %v1426 = vld [vmem:[#allocation2 + $0x94] sm:$0xf]
        %v1427 = vld [vmem:[#allocation2 + $0x98] sm:$0xf]
        %v1428 = vld [vmem:[#allocation2 + $0x9c] sm:$0xf]
        %v1429 = vld [vmem:[#allocation2 + $0xa0] sm:$0xf]
        %v1430 = vld [vmem:[#allocation2 + $0xa4] sm:$0xf]
        %v1431 = vld [vmem:[#allocation2 + $0xa8] sm:$0xf]
        %v1432 = vld [vmem:[#allocation2 + $0xac] sm:$0xf]
        %v1433 = vld [vmem:[#allocation2 + $0xb0] sm:$0xf]
        %v1434 = vld [vmem:[#allocation2 + $0xb4] sm:$0xf]
        %v1435 = vld [vmem:[#allocation2 + $0xb8] sm:$0xf]
        %v1436 = vld [vmem:[#allocation2 + $0xbc] sm:$0xf]
        %v1437 = vld [vmem:[#allocation2 + $0xc0] sm:$0xf]
        %v1438 = vld [vmem:[#allocation2 + $0xc4] sm:$0xf]
        %v1439 = vld [vmem:[#allocation2 + $0xc8] sm:$0xf]
        %v1440 = vld [vmem:[#allocation2 + $0xcc] sm:$0xf]
        %v1441 = vld [vmem:[#allocation2 + $0xd0] sm:$0xf]
        %v1442 = vld [vmem:[#allocation2 + $0xd4] sm:$0xf]
        %v1443 = vld [vmem:[#allocation2 + $0xd8] sm:$0xf]
        %v1444 = vld [vmem:[#allocation2 + $0xdc] sm:$0xf]
        %v1445 = vld [vmem:[#allocation2 + $0xe0] sm:$0xf]
        %v1446 = vld [vmem:[#allocation2 + $0xe4] sm:$0xf]
        %v1447 = vld [vmem:[#allocation2 + $0xe8] sm:$0xf]
        %v1448 = vld [vmem:[#allocation2 + $0xec] sm:$0xf]
        %v1449 = vld [vmem:[#allocation2 + $0xf0] sm:$0xf]
        %v1450 = vld [vmem:[#allocation2 + $0xf4] sm:$0xf]
        %v1451 = vld [vmem:[#allocation2 + $0xf8] sm:$0xf]
        %v1452 = vld [vmem:[#allocation2 + $0xfc] sm:$0xf]
        %v1453 = vld [vmem:[#allocation2 + $0x100] sm:$0xf]
        %v1454 = vld [vmem:[#allocation2 + $0x104] sm:$0xf]
        %v1455 = vld [vmem:[#allocation2 + $0x108] sm:$0xf]
        %v1456 = vld [vmem:[#allocation2 + $0x10c] sm:$0xf]
        %v1457 = vld [vmem:[#allocation2 + $0x110] sm:$0xf]
        %v1458 = vld [vmem:[#allocation2 + $0x114] sm:$0xf]
        %v1459 = vld [vmem:[#allocation2 + $0x118] sm:$0xf]
        %v1460 = vld [vmem:[#allocation2 + $0x11c] sm:$0xf]
        %v1461 = vld [vmem:[#allocation2 + $0x120] sm:$0xf]
        %v1462 = vld [vmem:[#allocation2 + $0x124] sm:$0xf]
        %v1463 = vld [vmem:[#allocation2 + $0x128] sm:$0xf]
        %v1464 = vld [vmem:[#allocation2 + $0x12c] sm:$0xf]
        %v1465 = vld [vmem:[#allocation2 + $0x130] sm:$0xf]
        %v1466 = vld [vmem:[#allocation2 + $0x134] sm:$0xf]
        %v1467 = vld [vmem:[#allocation2 + $0x138] sm:$0xf]
        %v1468 = vld [vmem:[#allocation2 + $0x13c] sm:$0xf]
        %v1469 = vld [vmem:[#allocation2 + $0x140] sm:$0xf]
        %v1470 = vld [vmem:[#allocation2 + $0x144] sm:$0xf]
        %v1471 = vld [vmem:[#allocation2 + $0x148] sm:$0xf]
        %v1472 = vld [vmem:[#allocation2 + $0x14c] sm:$0xf]
        %v1473 = vld [vmem:[#allocation2 + $0x150] sm:$0xf]
        %v1474 = vld [vmem:[#allocation2 + $0x154] sm:$0xf]
        %v1475 = vld [vmem:[#allocation2 + $0x158] sm:$0xf]
        %v1476 = vld [vmem:[#allocation2 + $0x15c] sm:$0xf]
        %v1477 = vld [vmem:[#allocation2 + $0x160] sm:$0xf]
        %v1478 = vld [vmem:[#allocation2 + $0x164] sm:$0xf]
        %v1479 = vld [vmem:[#allocation2 + $0x168] sm:$0xf]
        %v1480 = vld [vmem:[#allocation2 + $0x16c] sm:$0xf]
        %v1481 = vld [vmem:[#allocation2 + $0x170] sm:$0xf]
        %v1482 = vld [vmem:[#allocation2 + $0x174] sm:$0xf]
        %v1483 = vld [vmem:[#allocation2 + $0x178] sm:$0xf]
        %v1484 = vld [vmem:[#allocation2 + $0x17c] sm:$0xf]
        %v1485 = vld [vmem:[%s233] sm:$0xff]
        %v1486 = vld [vmem:[%s233 + $0x8] sm:$0xff]
        %v1487 = vld [vmem:[%s233 + $0x10] sm:$0xff]
        %v1488 = vld [vmem:[%s233 + $0x18] sm:$0xff]
        %v1489 = vld [vmem:[%s233 + $0x20] sm:$0xff]
        %v1490 = vld [vmem:[%s233 + $0x28] sm:$0xff]
        %v1491 = vld [vmem:[%s233 + $0x30] sm:$0xff]
        %v1492 = vld [vmem:[%s233 + $0x38] sm:$0xff]
        %v1493 = vld [vmem:[%s233 + $0x40] sm:$0xff]
        %v1494 = vld [vmem:[%s233 + $0x48] sm:$0xff]
        %v1495 = vld [vmem:[%s233 + $0x50] sm:$0xff]
        %v1496 = vld [vmem:[%s233 + $0x58] sm:$0xff]
        %v1497 = vld [vmem:[%s233 + $0x60] sm:$0xff]
        %v1498 = vld [vmem:[%s233 + $0x68] sm:$0xff]
        %v1499 = vld [vmem:[%s233 + $0x70] sm:$0xff]
        %v1500 = vld [vmem:[%s233 + $0x78] sm:$0xff]
        %v1597 = vunpack.c.l.b16 %v1389
        %v1598 = vunpack.c.l.b16 %v1390
        %v1599 = vunpack.c.l.b16 %v1391
        %v1600 = vunpack.c.l.b16 %v1392
        %v1601 = vunpack.c.l.b16 %v1393
        %v1602 = vunpack.c.l.b16 %v1394
        %v1603 = vunpack.c.l.b16 %v1395
        %v1604 = vunpack.c.l.b16 %v1396
        %v1605 = vunpack.c.l.b16 %v1397
        %v1606 = vunpack.c.l.b16 %v1398
        %v1607 = vunpack.c.l.b16 %v1399
        %v1608 = vunpack.c.l.b16 %v1400
        %v1609 = vunpack.c.l.b16 %v1401
        %v1610 = vunpack.c.l.b16 %v1402
        %v1611 = vunpack.c.l.b16 %v1403
        %v1612 = vunpack.c.l.b16 %v1404
        %v1613 = vunpack.c.l.b16 %v1405
        %v1614 = vunpack.c.l.b16 %v1406
        %v1615 = vunpack.c.l.b16 %v1407
        %v1616 = vunpack.c.l.b16 %v1408
        %v1617 = vunpack.c.l.b16 %v1409
        %v1618 = vunpack.c.l.b16 %v1410
        %v1619 = vunpack.c.l.b16 %v1411
        %v1620 = vunpack.c.l.b16 %v1412
        %v1621 = vunpack.c.l.b16 %v1413
        %v1622 = vunpack.c.l.b16 %v1414
        %v1623 = vunpack.c.l.b16 %v1415
        %v1624 = vunpack.c.l.b16 %v1416
        %v1625 = vunpack.c.l.b16 %v1417
        %v1626 = vunpack.c.l.b16 %v1418
        %v1627 = vunpack.c.l.b16 %v1419
        %v1628 = vunpack.c.l.b16 %v1420
        %v1629 = vunpack.c.l.b16 %v1421
        %v1630 = vunpack.c.l.b16 %v1422
        %v1631 = vunpack.c.l.b16 %v1423
        %v1632 = vunpack.c.l.b16 %v1424
        %v1633 = vunpack.c.l.b16 %v1425
        %v1634 = vunpack.c.l.b16 %v1426
        %v1635 = vunpack.c.l.b16 %v1427
        %v1636 = vunpack.c.l.b16 %v1428
        %v1637 = vunpack.c.l.b16 %v1429
        %v1638 = vunpack.c.l.b16 %v1430
        %v1639 = vunpack.c.l.b16 %v1431
        %v1640 = vunpack.c.l.b16 %v1432
        %v1641 = vunpack.c.l.b16 %v1433
        %v1642 = vunpack.c.l.b16 %v1434
        %v1643 = vunpack.c.l.b16 %v1435
        %v1644 = vunpack.c.l.b16 %v1436
        %v1645 = vunpack.c.l.b16 %v1437
        %v1646 = vunpack.c.l.b16 %v1438
        %v1647 = vunpack.c.l.b16 %v1439
        %v1648 = vunpack.c.l.b16 %v1440
        %v1649 = vunpack.c.l.b16 %v1441
        %v1650 = vunpack.c.l.b16 %v1442
        %v1651 = vunpack.c.l.b16 %v1443
        %v1652 = vunpack.c.l.b16 %v1444
        %v1653 = vunpack.c.l.b16 %v1445
        %v1654 = vunpack.c.l.b16 %v1446
        %v1655 = vunpack.c.l.b16 %v1447
        %v1656 = vunpack.c.l.b16 %v1448
        %v1657 = vunpack.c.l.b16 %v1449
        %v1658 = vunpack.c.l.b16 %v1450
        %v1659 = vunpack.c.l.b16 %v1451
        %v1660 = vunpack.c.l.b16 %v1452
        %v1661 = vunpack.c.l.b16 %v1453
        %v1662 = vunpack.c.l.b16 %v1454
        %v1663 = vunpack.c.l.b16 %v1455
        %v1664 = vunpack.c.l.b16 %v1456
        %v1665 = vunpack.c.l.b16 %v1457
        %v1666 = vunpack.c.l.b16 %v1458
        %v1667 = vunpack.c.l.b16 %v1459
        %v1668 = vunpack.c.l.b16 %v1460
        %v1669 = vunpack.c.l.b16 %v1461
        %v1670 = vunpack.c.l.b16 %v1462
        %v1671 = vunpack.c.l.b16 %v1463
        %v1672 = vunpack.c.l.b16 %v1464
        %v1673 = vunpack.c.l.b16 %v1465
        %v1674 = vunpack.c.l.b16 %v1466
        %v1675 = vunpack.c.l.b16 %v1467
        %v1676 = vunpack.c.l.b16 %v1468
        %v1677 = vunpack.c.l.b16 %v1469
        %v1678 = vunpack.c.l.b16 %v1470
        %v1679 = vunpack.c.l.b16 %v1471
        %v1680 = vunpack.c.l.b16 %v1472
        %v1681 = vunpack.c.l.b16 %v1473
        %v1682 = vunpack.c.l.b16 %v1474
        %v1683 = vunpack.c.l.b16 %v1475
        %v1684 = vunpack.c.l.b16 %v1476
        %v1685 = vunpack.c.l.b16 %v1477
        %v1686 = vunpack.c.l.b16 %v1478
        %v1687 = vunpack.c.l.b16 %v1479
        %v1688 = vunpack.c.l.b16 %v1480
        %v1689 = vunpack.c.l.b16 %v1481
        %v1690 = vunpack.c.l.b16 %v1482
        %v1691 = vunpack.c.l.b16 %v1483
        %v1692 = vunpack.c.l.b16 %v1484
        %v1693 = vpack.c.b16 %v1598, %v1597
        %v1694 = vpack.c.b16 %v1600, %v1599
        %v1695 = vpack.c.b16 %v1602, %v1601
        %v1696 = vpack.c.b16 %v1604, %v1603
        %v1697 = vpack.c.b16 %v1606, %v1605
        %v1698 = vpack.c.b16 %v1608, %v1607
        %v1699 = vpack.c.b16 %v1610, %v1609
        %v1700 = vpack.c.b16 %v1612, %v1611
        %v1701 = vpack.c.b16 %v1614, %v1613
        %v1702 = vpack.c.b16 %v1616, %v1615
        %v1703 = vpack.c.b16 %v1618, %v1617
        %v1704 = vpack.c.b16 %v1620, %v1619
        %v1705 = vpack.c.b16 %v1622, %v1621
        %v1706 = vpack.c.b16 %v1624, %v1623
        %v1707 = vpack.c.b16 %v1626, %v1625
        %v1708 = vpack.c.b16 %v1628, %v1627
        %v1709 = vpack.c.b16 %v1630, %v1629
        %v1710 = vpack.c.b16 %v1632, %v1631
        %v1711 = vpack.c.b16 %v1634, %v1633
        %v1712 = vpack.c.b16 %v1636, %v1635
        %v1713 = vpack.c.b16 %v1638, %v1637
        %v1714 = vpack.c.b16 %v1640, %v1639
        %v1715 = vpack.c.b16 %v1642, %v1641
        %v1716 = vpack.c.b16 %v1644, %v1643
        %v1717 = vpack.c.b16 %v1646, %v1645
        %v1718 = vpack.c.b16 %v1648, %v1647
        %v1719 = vpack.c.b16 %v1650, %v1649
        %v1720 = vpack.c.b16 %v1652, %v1651
        %v1721 = vpack.c.b16 %v1654, %v1653
        %v1722 = vpack.c.b16 %v1656, %v1655
        %v1723 = vpack.c.b16 %v1658, %v1657
        %v1724 = vpack.c.b16 %v1660, %v1659
        %v1725 = vpack.c.b16 %v1662, %v1661
        %v1726 = vpack.c.b16 %v1664, %v1663
        %v1727 = vpack.c.b16 %v1666, %v1665
        %v1728 = vpack.c.b16 %v1668, %v1667
        %v1729 = vpack.c.b16 %v1670, %v1669
        %v1730 = vpack.c.b16 %v1672, %v1671
        %v1731 = vpack.c.b16 %v1674, %v1673
        %v1732 = vpack.c.b16 %v1676, %v1675
        %v1733 = vpack.c.b16 %v1678, %v1677
        %v1734 = vpack.c.b16 %v1680, %v1679
        %v1735 = vpack.c.b16 %v1682, %v1681
        %v1736 = vpack.c.b16 %v1684, %v1683
        %v1737 = vpack.c.b16 %v1686, %v1685
        %v1738 = vpack.c.b16 %v1688, %v1687
        %v1739 = vpack.c.b16 %v1690, %v1689
        %v1740 = vpack.c.b16 %v1692, %v1691
        %v1805 = vunpack.c.l.b16 %v1485
        %v1806 = vunpack.c.h.b16 %v1485
        %v1807 = vunpack.c.l.b16 %v1486
        %v1808 = vunpack.c.h.b16 %v1486
        %v1809 = vunpack.c.l.b16 %v1487
        %v1810 = vunpack.c.h.b16 %v1487
        %v1811 = vunpack.c.l.b16 %v1488
        %v1812 = vunpack.c.h.b16 %v1488
        %v1813 = vunpack.c.l.b16 %v1489
        %v1814 = vunpack.c.h.b16 %v1489
        %v1815 = vunpack.c.l.b16 %v1490
        %v1816 = vunpack.c.h.b16 %v1490
        %v1817 = vunpack.c.l.b16 %v1491
        %v1818 = vunpack.c.h.b16 %v1491
        %v1819 = vunpack.c.l.b16 %v1492
        %v1820 = vunpack.c.h.b16 %v1492
        %v1821 = vunpack.c.l.b16 %v1493
        %v1822 = vunpack.c.h.b16 %v1493
        %v1823 = vunpack.c.l.b16 %v1494
        %v1824 = vunpack.c.h.b16 %v1494
        %v1825 = vunpack.c.l.b16 %v1495
        %v1826 = vunpack.c.h.b16 %v1495
        %v1827 = vunpack.c.l.b16 %v1496
        %v1828 = vunpack.c.h.b16 %v1496
        %v1829 = vunpack.c.l.b16 %v1497
        %v1830 = vunpack.c.h.b16 %v1497
        %v1831 = vunpack.c.l.b16 %v1498
        %v1832 = vunpack.c.h.b16 %v1498
        %v1833 = vunpack.c.l.b16 %v1499
        %v1834 = vunpack.c.h.b16 %v1499
        %v1835 = vunpack.c.l.b16 %v1500
        %v1836 = vunpack.c.h.b16 %v1500
        %v1837 = vpack.c.b16 %v1807, %v1805
        %v1838 = vpack.c.b16 %v1808, %v1806
        %v1839 = vpack.c.b16 %v1811, %v1809
        %v1840 = vpack.c.b16 %v1812, %v1810
        %v1841 = vpack.c.b16 %v1815, %v1813
        %v1842 = vpack.c.b16 %v1816, %v1814
        %v1843 = vpack.c.b16 %v1819, %v1817
        %v1844 = vpack.c.b16 %v1820, %v1818
        %v1845 = vpack.c.b16 %v1823, %v1821
        %v1846 = vpack.c.b16 %v1824, %v1822
        %v1847 = vpack.c.b16 %v1827, %v1825
        %v1848 = vpack.c.b16 %v1828, %v1826
        %v1849 = vpack.c.b16 %v1831, %v1829
        %v1850 = vpack.c.b16 %v1832, %v1830
        %v1851 = vpack.c.b16 %v1835, %v1833
        %v1852 = vpack.c.b16 %v1836, %v1834
        %1869 = vmatprep.subr.bf16.mxu0 %v1852
        %1870 = vmatpush1.bf16.msra.mxu0 %v1851
        %1871 = vmatprep.subr.bf16.mxu0 %v1850
        %1872 = vmatpush1.bf16.msra.mxu0 %v1849
        %1873 = vmatprep.subr.bf16.mxu0 %v1848
        %1874 = vmatpush1.bf16.msra.mxu0 %v1847
        %1875 = vmatprep.subr.bf16.mxu0 %v1846
        %1876 = vmatpush1.bf16.msra.mxu0 %v1845
        %1877 = vmatprep.subr.bf16.mxu0 %v1844
        %1878 = vmatpush1.bf16.msra.mxu0 %v1843
        %1879 = vmatprep.subr.bf16.mxu0 %v1842
        %1880 = vmatpush1.bf16.msra.mxu0 %v1841
        %1881 = vmatprep.subr.bf16.mxu0 %v1840
        %1882 = vmatpush1.bf16.msra.mxu0 %v1839
        %1883 = vmatprep.subr.bf16.mxu0 %v1838
        %1884 = vmatpush1.bf16.msra.mxu0 %v1837
        %1885 = vmatprep.subr.bf16.mxu0 0
        %1886 = vmatpush2.bf16.msra.mxu0 0
        %1887 = vmatprep.subr.bf16.mxu0 0
        %1888 = vmatpush2.bf16.msra.mxu0 0
        %1889 = vmatprep.subr.bf16.mxu0 0
        %1890 = vmatpush2.bf16.msra.mxu0 0
        %1891 = vmatprep.subr.bf16.mxu0 0
        %1892 = vmatpush2.bf16.msra.mxu0 0
        %1893 = vmatprep.subr.bf16.mxu0 0
        %1894 = vmatpush2.bf16.msra.mxu0 0
        %1895 = vmatprep.subr.bf16.mxu0 0
        %1896 = vmatpush2.bf16.msra.mxu0 0
        %1897 = vmatprep.subr.bf16.mxu0 0
        %1898 = vmatpush2.bf16.msra.mxu0 0
        %1899 = vmatprep.subr.bf16.mxu0 0
        %1900 = vmatpush2.bf16.msra.mxu0 0
        %1901 = vmatprep.mubr.bf16.mxu0 0
        %1902 = vmatmul.mubr.bf16.gmra.mxu0 %v1693
        %v1903 = vpop.f32.mrf.mxu0
        %v1904 = vadd.f32 0.0, %v1903
        %v1905 = vpop.f32.mrf.mxu0
        %v1906 = vadd.f32 0.0, %v1905
        %v1907 = vpop.f32.mrf.mxu0
        %v1908 = vadd.f32 0.0, %v1907
        %v1909 = vpop.f32.mrf.mxu0
        %v1910 = vadd.f32 0.0, %v1909
        %1911 = vmatprep.mubr.bf16.mxu0 0
        %1912 = vmatmul.mubr.bf16.gmra.mxu0 %v1694
        %v1913 = vpop.f32.mrf.mxu0
        %v1914 = vadd.f32 0.0, %v1913
        %v1915 = vpop.f32.mrf.mxu0
        %v1916 = vadd.f32 0.0, %v1915
        %v1917 = vpop.f32.mrf.mxu0
        %v1918 = vadd.f32 0.0, %v1917
        %v1919 = vpop.f32.mrf.mxu0
        %v1920 = vadd.f32 0.0, %v1919
        %1921 = vmatprep.mubr.bf16.mxu0 0
        %1922 = vmatmul.mubr.bf16.gmra.mxu0 %v1695
        %v1923 = vpop.f32.mrf.mxu0
        %v1924 = vadd.f32 0.0, %v1923
        %v1925 = vpop.f32.mrf.mxu0
        %v1926 = vadd.f32 0.0, %v1925
        %v1927 = vpop.f32.mrf.mxu0
        %v1928 = vadd.f32 0.0, %v1927
        %v1929 = vpop.f32.mrf.mxu0
        %v1930 = vadd.f32 0.0, %v1929
        %1931 = vmatprep.mubr.bf16.mxu0 0
        %1932 = vmatmul.mubr.bf16.gmra.mxu0 %v1696
        %v1933 = vpop.f32.mrf.mxu0
        %v1934 = vadd.f32 0.0, %v1933
        %v1935 = vpop.f32.mrf.mxu0
        %v1936 = vadd.f32 0.0, %v1935
        %v1937 = vpop.f32.mrf.mxu0
        %v1938 = vadd.f32 0.0, %v1937
        %v1939 = vpop.f32.mrf.mxu0
        %v1940 = vadd.f32 0.0, %v1939
        %1941 = vmatprep.mubr.bf16.mxu0 0
        %1942 = vmatmul.mubr.bf16.gmra.mxu0 %v1697
        %v1943 = vpop.f32.mrf.mxu0
        %v1944 = vadd.f32 0.0, %v1943
        %v1945 = vpop.f32.mrf.mxu0
        %v1946 = vadd.f32 0.0, %v1945
        %v1947 = vpop.f32.mrf.mxu0
        %v1948 = vadd.f32 0.0, %v1947
        %v1949 = vpop.f32.mrf.mxu0
        %v1950 = vadd.f32 0.0, %v1949
        %1951 = vmatprep.mubr.bf16.mxu0 0
        %1952 = vmatmul.mubr.bf16.gmra.mxu0 %v1698
        %v1953 = vpop.f32.mrf.mxu0
        %v1954 = vadd.f32 0.0, %v1953
        %v1955 = vpop.f32.mrf.mxu0
        %v1956 = vadd.f32 0.0, %v1955
        %v1957 = vpop.f32.mrf.mxu0
        %v1958 = vadd.f32 0.0, %v1957
        %v1959 = vpop.f32.mrf.mxu0
        %v1960 = vadd.f32 0.0, %v1959
        %1961 = vmatprep.mubr.bf16.mxu0 0
        %1962 = vmatmul.mubr.bf16.gmra.mxu0 %v1699
        %v1963 = vpop.f32.mrf.mxu0
        %v1964 = vadd.f32 0.0, %v1963
        %v1965 = vpop.f32.mrf.mxu0
        %v1966 = vadd.f32 0.0, %v1965
        %v1967 = vpop.f32.mrf.mxu0
        %v1968 = vadd.f32 0.0, %v1967
        %v1969 = vpop.f32.mrf.mxu0
        %v1970 = vadd.f32 0.0, %v1969
        %1971 = vmatprep.mubr.bf16.mxu0 0
        %1972 = vmatmul.mubr.bf16.gmra.mxu0 %v1700
        %v1973 = vpop.f32.mrf.mxu0
        %v1974 = vadd.f32 0.0, %v1973
        %v1975 = vpop.f32.mrf.mxu0
        %v1976 = vadd.f32 0.0, %v1975
        %v1977 = vpop.f32.mrf.mxu0
        %v1978 = vadd.f32 0.0, %v1977
        %v1979 = vpop.f32.mrf.mxu0
        %v1980 = vadd.f32 0.0, %v1979
        %1981 = vmatprep.mubr.bf16.mxu0 0
        %1982 = vmatmul.mubr.bf16.gmra.mxu0 %v1701
        %v1983 = vpop.f32.mrf.mxu0
        %v1984 = vadd.f32 0.0, %v1983
        %v1985 = vpop.f32.mrf.mxu0
        %v1986 = vadd.f32 0.0, %v1985
        %v1987 = vpop.f32.mrf.mxu0
        %v1988 = vadd.f32 0.0, %v1987
        %v1989 = vpop.f32.mrf.mxu0
        %v1990 = vadd.f32 0.0, %v1989
        %1991 = vmatprep.mubr.bf16.mxu0 0
        %1992 = vmatmul.mubr.bf16.gmra.mxu0 %v1702
        %v1993 = vpop.f32.mrf.mxu0
        %v1994 = vadd.f32 0.0, %v1993
        %v1995 = vpop.f32.mrf.mxu0
        %v1996 = vadd.f32 0.0, %v1995
        %v1997 = vpop.f32.mrf.mxu0
        %v1998 = vadd.f32 0.0, %v1997
        %v1999 = vpop.f32.mrf.mxu0
        %v2000 = vadd.f32 0.0, %v1999
        %2001 = vmatprep.mubr.bf16.mxu0 0
        %2002 = vmatmul.mubr.bf16.gmra.mxu0 %v1703
        %v2003 = vpop.f32.mrf.mxu0
        %v2004 = vadd.f32 0.0, %v2003
        %v2005 = vpop.f32.mrf.mxu0
        %v2006 = vadd.f32 0.0, %v2005
        %v2007 = vpop.f32.mrf.mxu0
        %v2008 = vadd.f32 0.0, %v2007
        %v2009 = vpop.f32.mrf.mxu0
        %v2010 = vadd.f32 0.0, %v2009
        %2011 = vmatprep.mubr.bf16.mxu0 0
        %2012 = vmatmul.mubr.bf16.gmra.mxu0 %v1704
        %v2013 = vpop.f32.mrf.mxu0
        %v2014 = vadd.f32 0.0, %v2013
        %v2015 = vpop.f32.mrf.mxu0
        %v2016 = vadd.f32 0.0, %v2015
        %v2017 = vpop.f32.mrf.mxu0
        %v2018 = vadd.f32 0.0, %v2017
        %v2019 = vpop.f32.mrf.mxu0
        %v2020 = vadd.f32 0.0, %v2019
        %2021 = vmatprep.mubr.bf16.mxu0 0
        %2022 = vmatmul.mubr.bf16.gmra.mxu0 %v1705
        %v2023 = vpop.f32.mrf.mxu0
        %v2024 = vadd.f32 0.0, %v2023
        %v2025 = vpop.f32.mrf.mxu0
        %v2026 = vadd.f32 0.0, %v2025
        %v2027 = vpop.f32.mrf.mxu0
        %v2028 = vadd.f32 0.0, %v2027
        %v2029 = vpop.f32.mrf.mxu0
        %v2030 = vadd.f32 0.0, %v2029
        %2031 = vmatprep.mubr.bf16.mxu0 0
        %2032 = vmatmul.mubr.bf16.gmra.mxu0 %v1706
        %v2033 = vpop.f32.mrf.mxu0
        %v2034 = vadd.f32 0.0, %v2033
        %v2035 = vpop.f32.mrf.mxu0
        %v2036 = vadd.f32 0.0, %v2035
        %v2037 = vpop.f32.mrf.mxu0
        %v2038 = vadd.f32 0.0, %v2037
        %v2039 = vpop.f32.mrf.mxu0
        %v2040 = vadd.f32 0.0, %v2039
        %2041 = vmatprep.mubr.bf16.mxu0 0
        %2042 = vmatmul.mubr.bf16.gmra.mxu0 %v1707
        %v2043 = vpop.f32.mrf.mxu0
        %v2044 = vadd.f32 0.0, %v2043
        %v2045 = vpop.f32.mrf.mxu0
        %v2046 = vadd.f32 0.0, %v2045
        %v2047 = vpop.f32.mrf.mxu0
        %v2048 = vadd.f32 0.0, %v2047
        %v2049 = vpop.f32.mrf.mxu0
        %v2050 = vadd.f32 0.0, %v2049
        %2051 = vmatprep.mubr.bf16.mxu0 0
        %2052 = vmatmul.mubr.bf16.gmra.mxu0 %v1708
        %v2053 = vpop.f32.mrf.mxu0
        %v2054 = vadd.f32 0.0, %v2053
        %v2055 = vpop.f32.mrf.mxu0
        %v2056 = vadd.f32 0.0, %v2055
        %v2057 = vpop.f32.mrf.mxu0
        %v2058 = vadd.f32 0.0, %v2057
        %v2059 = vpop.f32.mrf.mxu0
        %v2060 = vadd.f32 0.0, %v2059
        %2061 = vmatprep.mubr.bf16.mxu0 0
        %2062 = vmatmul.mubr.bf16.gmra.mxu0 %v1709
        %v2063 = vpop.f32.mrf.mxu0
        %v2064 = vadd.f32 0.0, %v2063
        %v2065 = vpop.f32.mrf.mxu0
        %v2066 = vadd.f32 0.0, %v2065
        %v2067 = vpop.f32.mrf.mxu0
        %v2068 = vadd.f32 0.0, %v2067
        %v2069 = vpop.f32.mrf.mxu0
        %v2070 = vadd.f32 0.0, %v2069
        %2071 = vmatprep.mubr.bf16.mxu0 0
        %2072 = vmatmul.mubr.bf16.gmra.mxu0 %v1710
        %v2073 = vpop.f32.mrf.mxu0
        %v2074 = vadd.f32 0.0, %v2073
        %v2075 = vpop.f32.mrf.mxu0
        %v2076 = vadd.f32 0.0, %v2075
        %v2077 = vpop.f32.mrf.mxu0
        %v2078 = vadd.f32 0.0, %v2077
        %v2079 = vpop.f32.mrf.mxu0
        %v2080 = vadd.f32 0.0, %v2079
        %2081 = vmatprep.mubr.bf16.mxu0 0
        %2082 = vmatmul.mubr.bf16.gmra.mxu0 %v1711
        %v2083 = vpop.f32.mrf.mxu0
        %v2084 = vadd.f32 0.0, %v2083
        %v2085 = vpop.f32.mrf.mxu0
        %v2086 = vadd.f32 0.0, %v2085
        %v2087 = vpop.f32.mrf.mxu0
        %v2088 = vadd.f32 0.0, %v2087
        %v2089 = vpop.f32.mrf.mxu0
        %v2090 = vadd.f32 0.0, %v2089
        %2091 = vmatprep.mubr.bf16.mxu0 0
        %2092 = vmatmul.mubr.bf16.gmra.mxu0 %v1712
        %v2093 = vpop.f32.mrf.mxu0
        %v2094 = vadd.f32 0.0, %v2093
        %v2095 = vpop.f32.mrf.mxu0
        %v2096 = vadd.f32 0.0, %v2095
        %v2097 = vpop.f32.mrf.mxu0
        %v2098 = vadd.f32 0.0, %v2097
        %v2099 = vpop.f32.mrf.mxu0
        %v2100 = vadd.f32 0.0, %v2099
        %2101 = vmatprep.mubr.bf16.mxu0 0
        %2102 = vmatmul.mubr.bf16.gmra.mxu0 %v1713
        %v2103 = vpop.f32.mrf.mxu0
        %v2104 = vadd.f32 0.0, %v2103
        %v2105 = vpop.f32.mrf.mxu0
        %v2106 = vadd.f32 0.0, %v2105
        %v2107 = vpop.f32.mrf.mxu0
        %v2108 = vadd.f32 0.0, %v2107
        %v2109 = vpop.f32.mrf.mxu0
        %v2110 = vadd.f32 0.0, %v2109
        %2111 = vmatprep.mubr.bf16.mxu0 0
        %2112 = vmatmul.mubr.bf16.gmra.mxu0 %v1714
        %v2113 = vpop.f32.mrf.mxu0
        %v2114 = vadd.f32 0.0, %v2113
        %v2115 = vpop.f32.mrf.mxu0
        %v2116 = vadd.f32 0.0, %v2115
        %v2117 = vpop.f32.mrf.mxu0
        %v2118 = vadd.f32 0.0, %v2117
        %v2119 = vpop.f32.mrf.mxu0
        %v2120 = vadd.f32 0.0, %v2119
        %2121 = vmatprep.mubr.bf16.mxu0 0
        %2122 = vmatmul.mubr.bf16.gmra.mxu0 %v1715
        %v2123 = vpop.f32.mrf.mxu0
        %v2124 = vadd.f32 0.0, %v2123
        %v2125 = vpop.f32.mrf.mxu0
        %v2126 = vadd.f32 0.0, %v2125
        %v2127 = vpop.f32.mrf.mxu0
        %v2128 = vadd.f32 0.0, %v2127
        %v2129 = vpop.f32.mrf.mxu0
        %v2130 = vadd.f32 0.0, %v2129
        %2131 = vmatprep.mubr.bf16.mxu0 0
        %2132 = vmatmul.mubr.bf16.gmra.mxu0 %v1716
        %v2133 = vpop.f32.mrf.mxu0
        %v2134 = vadd.f32 0.0, %v2133
        %v2135 = vpop.f32.mrf.mxu0
        %v2136 = vadd.f32 0.0, %v2135
        %v2137 = vpop.f32.mrf.mxu0
        %v2138 = vadd.f32 0.0, %v2137
        %v2139 = vpop.f32.mrf.mxu0
        %v2140 = vadd.f32 0.0, %v2139
        %2141 = vmatprep.mubr.bf16.mxu0 0
        %2142 = vmatmul.mubr.bf16.gmra.mxu0 %v1717
        %v2143 = vpop.f32.mrf.mxu0
        %v2144 = vadd.f32 0.0, %v2143
        %v2145 = vpop.f32.mrf.mxu0
        %v2146 = vadd.f32 0.0, %v2145
        %v2147 = vpop.f32.mrf.mxu0
        %v2148 = vadd.f32 0.0, %v2147
        %v2149 = vpop.f32.mrf.mxu0
        %v2150 = vadd.f32 0.0, %v2149
        %2151 = vmatprep.mubr.bf16.mxu0 0
        %2152 = vmatmul.mubr.bf16.gmra.mxu0 %v1718
        %v2153 = vpop.f32.mrf.mxu0
        %v2154 = vadd.f32 0.0, %v2153
        %v2155 = vpop.f32.mrf.mxu0
        %v2156 = vadd.f32 0.0, %v2155
        %v2157 = vpop.f32.mrf.mxu0
        %v2158 = vadd.f32 0.0, %v2157
        %v2159 = vpop.f32.mrf.mxu0
        %v2160 = vadd.f32 0.0, %v2159
        %2161 = vmatprep.mubr.bf16.mxu0 0
        %2162 = vmatmul.mubr.bf16.gmra.mxu0 %v1719
        %v2163 = vpop.f32.mrf.mxu0
        %v2164 = vadd.f32 0.0, %v2163
        %v2165 = vpop.f32.mrf.mxu0
        %v2166 = vadd.f32 0.0, %v2165
        %v2167 = vpop.f32.mrf.mxu0
        %v2168 = vadd.f32 0.0, %v2167
        %v2169 = vpop.f32.mrf.mxu0
        %v2170 = vadd.f32 0.0, %v2169
        %2171 = vmatprep.mubr.bf16.mxu0 0
        %2172 = vmatmul.mubr.bf16.gmra.mxu0 %v1720
        %v2173 = vpop.f32.mrf.mxu0
        %v2174 = vadd.f32 0.0, %v2173
        %v2175 = vpop.f32.mrf.mxu0
        %v2176 = vadd.f32 0.0, %v2175
        %v2177 = vpop.f32.mrf.mxu0
        %v2178 = vadd.f32 0.0, %v2177
        %v2179 = vpop.f32.mrf.mxu0
        %v2180 = vadd.f32 0.0, %v2179
        %2181 = vmatprep.mubr.bf16.mxu0 0
        %2182 = vmatmul.mubr.bf16.gmra.mxu0 %v1721
        %v2183 = vpop.f32.mrf.mxu0
        %v2184 = vadd.f32 0.0, %v2183
        %v2185 = vpop.f32.mrf.mxu0
        %v2186 = vadd.f32 0.0, %v2185
        %v2187 = vpop.f32.mrf.mxu0
        %v2188 = vadd.f32 0.0, %v2187
        %v2189 = vpop.f32.mrf.mxu0
        %v2190 = vadd.f32 0.0, %v2189
        %2191 = vmatprep.mubr.bf16.mxu0 0
        %2192 = vmatmul.mubr.bf16.gmra.mxu0 %v1722
        %v2193 = vpop.f32.mrf.mxu0
        %v2194 = vadd.f32 0.0, %v2193
        %v2195 = vpop.f32.mrf.mxu0
        %v2196 = vadd.f32 0.0, %v2195
        %v2197 = vpop.f32.mrf.mxu0
        %v2198 = vadd.f32 0.0, %v2197
        %v2199 = vpop.f32.mrf.mxu0
        %v2200 = vadd.f32 0.0, %v2199
        %2201 = vmatprep.mubr.bf16.mxu0 0
        %2202 = vmatmul.mubr.bf16.gmra.mxu0 %v1723
        %v2203 = vpop.f32.mrf.mxu0
        %v2204 = vadd.f32 0.0, %v2203
        %v2205 = vpop.f32.mrf.mxu0
        %v2206 = vadd.f32 0.0, %v2205
        %v2207 = vpop.f32.mrf.mxu0
        %v2208 = vadd.f32 0.0, %v2207
        %v2209 = vpop.f32.mrf.mxu0
        %v2210 = vadd.f32 0.0, %v2209
        %2211 = vmatprep.mubr.bf16.mxu0 0
        %2212 = vmatmul.mubr.bf16.gmra.mxu0 %v1724
        %v2213 = vpop.f32.mrf.mxu0
        %v2214 = vadd.f32 0.0, %v2213
        %v2215 = vpop.f32.mrf.mxu0
        %v2216 = vadd.f32 0.0, %v2215
        %v2217 = vpop.f32.mrf.mxu0
        %v2218 = vadd.f32 0.0, %v2217
        %v2219 = vpop.f32.mrf.mxu0
        %v2220 = vadd.f32 0.0, %v2219
        %2221 = vmatprep.mubr.bf16.mxu0 0
        %2222 = vmatmul.mubr.bf16.gmra.mxu0 %v1725
        %v2223 = vpop.f32.mrf.mxu0
        %v2224 = vadd.f32 0.0, %v2223
        %v2225 = vpop.f32.mrf.mxu0
        %v2226 = vadd.f32 0.0, %v2225
        %v2227 = vpop.f32.mrf.mxu0
        %v2228 = vadd.f32 0.0, %v2227
        %v2229 = vpop.f32.mrf.mxu0
        %v2230 = vadd.f32 0.0, %v2229
        %2231 = vmatprep.mubr.bf16.mxu0 0
        %2232 = vmatmul.mubr.bf16.gmra.mxu0 %v1726
        %v2233 = vpop.f32.mrf.mxu0
        %v2234 = vadd.f32 0.0, %v2233
        %v2235 = vpop.f32.mrf.mxu0
        %v2236 = vadd.f32 0.0, %v2235
        %v2237 = vpop.f32.mrf.mxu0
        %v2238 = vadd.f32 0.0, %v2237
        %v2239 = vpop.f32.mrf.mxu0
        %v2240 = vadd.f32 0.0, %v2239
        %2241 = vmatprep.mubr.bf16.mxu0 0
        %2242 = vmatmul.mubr.bf16.gmra.mxu0 %v1727
        %v2243 = vpop.f32.mrf.mxu0
        %v2244 = vadd.f32 0.0, %v2243
        %v2245 = vpop.f32.mrf.mxu0
        %v2246 = vadd.f32 0.0, %v2245
        %v2247 = vpop.f32.mrf.mxu0
        %v2248 = vadd.f32 0.0, %v2247
        %v2249 = vpop.f32.mrf.mxu0
        %v2250 = vadd.f32 0.0, %v2249
        %2251 = vmatprep.mubr.bf16.mxu0 0
        %2252 = vmatmul.mubr.bf16.gmra.mxu0 %v1728
        %v2253 = vpop.f32.mrf.mxu0
        %v2254 = vadd.f32 0.0, %v2253
        %v2255 = vpop.f32.mrf.mxu0
        %v2256 = vadd.f32 0.0, %v2255
        %v2257 = vpop.f32.mrf.mxu0
        %v2258 = vadd.f32 0.0, %v2257
        %v2259 = vpop.f32.mrf.mxu0
        %v2260 = vadd.f32 0.0, %v2259
        %2261 = vmatprep.mubr.bf16.mxu0 0
        %2262 = vmatmul.mubr.bf16.gmra.mxu0 %v1729
        %v2263 = vpop.f32.mrf.mxu0
        %v2264 = vadd.f32 0.0, %v2263
        %v2265 = vpop.f32.mrf.mxu0
        %v2266 = vadd.f32 0.0, %v2265
        %v2267 = vpop.f32.mrf.mxu0
        %v2268 = vadd.f32 0.0, %v2267
        %v2269 = vpop.f32.mrf.mxu0
        %v2270 = vadd.f32 0.0, %v2269
        %2271 = vmatprep.mubr.bf16.mxu0 0
        %2272 = vmatmul.mubr.bf16.gmra.mxu0 %v1730
        %v2273 = vpop.f32.mrf.mxu0
        %v2274 = vadd.f32 0.0, %v2273
        %v2275 = vpop.f32.mrf.mxu0
        %v2276 = vadd.f32 0.0, %v2275
        %v2277 = vpop.f32.mrf.mxu0
        %v2278 = vadd.f32 0.0, %v2277
        %v2279 = vpop.f32.mrf.mxu0
        %v2280 = vadd.f32 0.0, %v2279
        %2281 = vmatprep.mubr.bf16.mxu0 0
        %2282 = vmatmul.mubr.bf16.gmra.mxu0 %v1731
        %v2283 = vpop.f32.mrf.mxu0
        %v2284 = vadd.f32 0.0, %v2283
        %v2285 = vpop.f32.mrf.mxu0
        %v2286 = vadd.f32 0.0, %v2285
        %v2287 = vpop.f32.mrf.mxu0
        %v2288 = vadd.f32 0.0, %v2287
        %v2289 = vpop.f32.mrf.mxu0
        %v2290 = vadd.f32 0.0, %v2289
        %2291 = vmatprep.mubr.bf16.mxu0 0
        %2292 = vmatmul.mubr.bf16.gmra.mxu0 %v1732
        %v2293 = vpop.f32.mrf.mxu0
        %v2294 = vadd.f32 0.0, %v2293
        %v2295 = vpop.f32.mrf.mxu0
        %v2296 = vadd.f32 0.0, %v2295
        %v2297 = vpop.f32.mrf.mxu0
        %v2298 = vadd.f32 0.0, %v2297
        %v2299 = vpop.f32.mrf.mxu0
        %v2300 = vadd.f32 0.0, %v2299
        %2301 = vmatprep.mubr.bf16.mxu0 0
        %2302 = vmatmul.mubr.bf16.gmra.mxu0 %v1733
        %v2303 = vpop.f32.mrf.mxu0
        %v2304 = vadd.f32 0.0, %v2303
        %v2305 = vpop.f32.mrf.mxu0
        %v2306 = vadd.f32 0.0, %v2305
        %v2307 = vpop.f32.mrf.mxu0
        %v2308 = vadd.f32 0.0, %v2307
        %v2309 = vpop.f32.mrf.mxu0
        %v2310 = vadd.f32 0.0, %v2309
        %2311 = vmatprep.mubr.bf16.mxu0 0
        %2312 = vmatmul.mubr.bf16.gmra.mxu0 %v1734
        %v2313 = vpop.f32.mrf.mxu0
        %v2314 = vadd.f32 0.0, %v2313
        %v2315 = vpop.f32.mrf.mxu0
        %v2316 = vadd.f32 0.0, %v2315
        %v2317 = vpop.f32.mrf.mxu0
        %v2318 = vadd.f32 0.0, %v2317
        %v2319 = vpop.f32.mrf.mxu0
        %v2320 = vadd.f32 0.0, %v2319
        %2321 = vmatprep.mubr.bf16.mxu0 0
        %2322 = vmatmul.mubr.bf16.gmra.mxu0 %v1735
        %v2323 = vpop.f32.mrf.mxu0
        %v2324 = vadd.f32 0.0, %v2323
        %v2325 = vpop.f32.mrf.mxu0
        %v2326 = vadd.f32 0.0, %v2325
        %v2327 = vpop.f32.mrf.mxu0
        %v2328 = vadd.f32 0.0, %v2327
        %v2329 = vpop.f32.mrf.mxu0
        %v2330 = vadd.f32 0.0, %v2329
        %2331 = vmatprep.mubr.bf16.mxu0 0
        %2332 = vmatmul.mubr.bf16.gmra.mxu0 %v1736
        %v2333 = vpop.f32.mrf.mxu0
        %v2334 = vadd.f32 0.0, %v2333
        %v2335 = vpop.f32.mrf.mxu0
        %v2336 = vadd.f32 0.0, %v2335
        %v2337 = vpop.f32.mrf.mxu0
        %v2338 = vadd.f32 0.0, %v2337
        %v2339 = vpop.f32.mrf.mxu0
        %v2340 = vadd.f32 0.0, %v2339
        %2341 = vmatprep.mubr.bf16.mxu0 0
        %2342 = vmatmul.mubr.bf16.gmra.mxu0 %v1737
        %v2343 = vpop.f32.mrf.mxu0
        %v2344 = vadd.f32 0.0, %v2343
        %v2345 = vpop.f32.mrf.mxu0
        %v2346 = vadd.f32 0.0, %v2345
        %v2347 = vpop.f32.mrf.mxu0
        %v2348 = vadd.f32 0.0, %v2347
        %v2349 = vpop.f32.mrf.mxu0
        %v2350 = vadd.f32 0.0, %v2349
        %2351 = vmatprep.mubr.bf16.mxu0 0
        %2352 = vmatmul.mubr.bf16.gmra.mxu0 %v1738
        %v2353 = vpop.f32.mrf.mxu0
        %v2354 = vadd.f32 0.0, %v2353
        %v2355 = vpop.f32.mrf.mxu0
        %v2356 = vadd.f32 0.0, %v2355
        %v2357 = vpop.f32.mrf.mxu0
        %v2358 = vadd.f32 0.0, %v2357
        %v2359 = vpop.f32.mrf.mxu0
        %v2360 = vadd.f32 0.0, %v2359
        %2361 = vmatprep.mubr.bf16.mxu0 0
        %2362 = vmatmul.mubr.bf16.gmra.mxu0 %v1739
        %v2363 = vpop.f32.mrf.mxu0
        %v2364 = vadd.f32 0.0, %v2363
        %v2365 = vpop.f32.mrf.mxu0
        %v2366 = vadd.f32 0.0, %v2365
        %v2367 = vpop.f32.mrf.mxu0
        %v2368 = vadd.f32 0.0, %v2367
        %v2369 = vpop.f32.mrf.mxu0
        %v2370 = vadd.f32 0.0, %v2369
        %2371 = vmatprep.mubr.bf16.mxu0 0
        %2372 = vmatmul.mubr.bf16.gmra.mxu0 %v1740
        %v2373 = vpop.f32.mrf.mxu0
        %v2374 = vadd.f32 0.0, %v2373
        %v2375 = vpop.f32.mrf.mxu0
        %v2376 = vadd.f32 0.0, %v2375
        %v2377 = vpop.f32.mrf.mxu0
        %v2378 = vadd.f32 0.0, %v2377
        %v2379 = vpop.f32.mrf.mxu0
        %v2380 = vadd.f32 0.0, %v2379
        %2381 = vdwg.mxu0
        %v2382 = vpack.c.bf16 %v1908, %v1904
        %v2383 = vpack.c.bf16 %v1910, %v1906
        %v2384 = vpack.c.bf16 %v1918, %v1914
        %v2385 = vpack.c.bf16 %v1920, %v1916
        %v2386 = vpack.c.bf16 %v1928, %v1924
        %v2387 = vpack.c.bf16 %v1930, %v1926
        %v2388 = vpack.c.bf16 %v1938, %v1934
        %v2389 = vpack.c.bf16 %v1940, %v1936
        %v2390 = vpack.c.bf16 %v1948, %v1944
        %v2391 = vpack.c.bf16 %v1950, %v1946
        %v2392 = vpack.c.bf16 %v1958, %v1954
        %v2393 = vpack.c.bf16 %v1960, %v1956
        %v2394 = vpack.c.bf16 %v1968, %v1964
        %v2395 = vpack.c.bf16 %v1970, %v1966
        %v2396 = vpack.c.bf16 %v1978, %v1974
        %v2397 = vpack.c.bf16 %v1980, %v1976
        %v2398 = vpack.c.bf16 %v1988, %v1984
        %v2399 = vpack.c.bf16 %v1990, %v1986
        %v2400 = vpack.c.bf16 %v1998, %v1994
        %v2401 = vpack.c.bf16 %v2000, %v1996
        %v2402 = vpack.c.bf16 %v2008, %v2004
        %v2403 = vpack.c.bf16 %v2010, %v2006
        %v2404 = vpack.c.bf16 %v2018, %v2014
        %v2405 = vpack.c.bf16 %v2020, %v2016
        %v2406 = vpack.c.bf16 %v2028, %v2024
        %v2407 = vpack.c.bf16 %v2030, %v2026
        %v2408 = vpack.c.bf16 %v2038, %v2034
        %v2409 = vpack.c.bf16 %v2040, %v2036
        %v2410 = vpack.c.bf16 %v2048, %v2044
        %v2411 = vpack.c.bf16 %v2050, %v2046
        %v2412 = vpack.c.bf16 %v2058, %v2054
        %v2413 = vpack.c.bf16 %v2060, %v2056
        %v2446 = vunpack.c.l.b16 %v2382
        %v2447 = vunpack.c.l.b16 %v2383
        %v2448 = vunpack.c.h.b16 %v2382
        %v2449 = vunpack.c.h.b16 %v2383
        %v2450 = vunpack.c.l.b16 %v2384
        %v2451 = vunpack.c.l.b16 %v2385
        %v2452 = vunpack.c.h.b16 %v2384
        %v2453 = vunpack.c.h.b16 %v2385
        %v2454 = vunpack.c.l.b16 %v2386
        %v2455 = vunpack.c.l.b16 %v2387
        %v2456 = vunpack.c.h.b16 %v2386
        %v2457 = vunpack.c.h.b16 %v2387
        %v2458 = vunpack.c.l.b16 %v2388
        %v2459 = vunpack.c.l.b16 %v2389
        %v2460 = vunpack.c.h.b16 %v2388
        %v2461 = vunpack.c.h.b16 %v2389
        %v2462 = vunpack.c.l.b16 %v2390
        %v2463 = vunpack.c.l.b16 %v2391
        %v2464 = vunpack.c.h.b16 %v2390
        %v2465 = vunpack.c.h.b16 %v2391
        %v2466 = vunpack.c.l.b16 %v2392
        %v2467 = vunpack.c.l.b16 %v2393
        %v2468 = vunpack.c.h.b16 %v2392
        %v2469 = vunpack.c.h.b16 %v2393
        %v2470 = vunpack.c.l.b16 %v2394
        %v2471 = vunpack.c.l.b16 %v2395
        %v2472 = vunpack.c.h.b16 %v2394
        %v2473 = vunpack.c.h.b16 %v2395
        %v2474 = vunpack.c.l.b16 %v2396
        %v2475 = vunpack.c.l.b16 %v2397
        %v2476 = vunpack.c.h.b16 %v2396
        %v2477 = vunpack.c.h.b16 %v2397
        %v2478 = vunpack.c.l.b16 %v2398
        %v2479 = vunpack.c.l.b16 %v2399
        %v2480 = vunpack.c.h.b16 %v2398
        %v2481 = vunpack.c.h.b16 %v2399
        %v2482 = vunpack.c.l.b16 %v2400
        %v2483 = vunpack.c.l.b16 %v2401
        %v2484 = vunpack.c.h.b16 %v2400
        %v2485 = vunpack.c.h.b16 %v2401
        %v2486 = vunpack.c.l.b16 %v2402
        %v2487 = vunpack.c.l.b16 %v2403
        %v2488 = vunpack.c.h.b16 %v2402
        %v2489 = vunpack.c.h.b16 %v2403
        %v2490 = vunpack.c.l.b16 %v2404
        %v2491 = vunpack.c.l.b16 %v2405
        %v2492 = vunpack.c.h.b16 %v2404
        %v2493 = vunpack.c.h.b16 %v2405
        %v2494 = vunpack.c.l.b16 %v2406
        %v2495 = vunpack.c.l.b16 %v2407
        %v2496 = vunpack.c.h.b16 %v2406
        %v2497 = vunpack.c.h.b16 %v2407
        %v2498 = vunpack.c.l.b16 %v2408
        %v2499 = vunpack.c.l.b16 %v2409
        %v2500 = vunpack.c.h.b16 %v2408
        %v2501 = vunpack.c.h.b16 %v2409
        %v2502 = vunpack.c.l.b16 %v2410
        %v2503 = vunpack.c.l.b16 %v2411
        %v2504 = vunpack.c.h.b16 %v2410
        %v2505 = vunpack.c.h.b16 %v2411
        %v2506 = vunpack.c.l.b16 %v2412
        %v2507 = vunpack.c.l.b16 %v2413
        %v2508 = vunpack.c.h.b16 %v2412
        %v2509 = vunpack.c.h.b16 %v2413
        %v2510 = vpack.c.b16 %v2447, %v2446
        %v2511 = vpack.c.b16 %v2449, %v2448
        %v2512 = vpack.c.b16 %v2451, %v2450
        %v2513 = vpack.c.b16 %v2453, %v2452
        %v2514 = vpack.c.b16 %v2455, %v2454
        %v2515 = vpack.c.b16 %v2457, %v2456
        %v2516 = vpack.c.b16 %v2459, %v2458
        %v2517 = vpack.c.b16 %v2461, %v2460
        %v2518 = vpack.c.b16 %v2463, %v2462
        %v2519 = vpack.c.b16 %v2465, %v2464
        %v2520 = vpack.c.b16 %v2467, %v2466
        %v2521 = vpack.c.b16 %v2469, %v2468
        %v2522 = vpack.c.b16 %v2471, %v2470
        %v2523 = vpack.c.b16 %v2473, %v2472
        %v2524 = vpack.c.b16 %v2475, %v2474
        %v2525 = vpack.c.b16 %v2477, %v2476
        %v2526 = vpack.c.b16 %v2479, %v2478
        %v2527 = vpack.c.b16 %v2481, %v2480
        %v2528 = vpack.c.b16 %v2483, %v2482
        %v2529 = vpack.c.b16 %v2485, %v2484
        %v2530 = vpack.c.b16 %v2487, %v2486
        %v2531 = vpack.c.b16 %v2489, %v2488
        %v2532 = vpack.c.b16 %v2491, %v2490
        %v2533 = vpack.c.b16 %v2493, %v2492
        %v2534 = vpack.c.b16 %v2495, %v2494
        %v2535 = vpack.c.b16 %v2497, %v2496
        %v2536 = vpack.c.b16 %v2499, %v2498
        %v2537 = vpack.c.b16 %v2501, %v2500
        %v2538 = vpack.c.b16 %v2503, %v2502
        %v2539 = vpack.c.b16 %v2505, %v2504
        %v2540 = vpack.c.b16 %v2507, %v2506
        %v2541 = vpack.c.b16 %v2509, %v2508
        %2574 = vst [vmem:[%s265] sm:$0xff] %v2510
        %2575 = vst [vmem:[%s265 + $0x8] sm:$0xff] %v2511
        %2576 = vst [vmem:[%s265 + $0x10] sm:$0xff] %v2512
        %2577 = vst [vmem:[%s265 + $0x18] sm:$0xff] %v2513
        %2578 = vst [vmem:[%s265 + $0x20] sm:$0xff] %v2514
        %2579 = vst [vmem:[%s265 + $0x28] sm:$0xff] %v2515
        %2580 = vst [vmem:[%s265 + $0x30] sm:$0xff] %v2516
        %2581 = vst [vmem:[%s265 + $0x38] sm:$0xff] %v2517
        %2582 = vst [vmem:[%s265 + $0x40] sm:$0xff] %v2518
        %2583 = vst [vmem:[%s265 + $0x48] sm:$0xff] %v2519
        %2584 = vst [vmem:[%s265 + $0x50] sm:$0xff] %v2520
        %2585 = vst [vmem:[%s265 + $0x58] sm:$0xff] %v2521
        %2586 = vst [vmem:[%s265 + $0x60] sm:$0xff] %v2522
        %2587 = vst [vmem:[%s265 + $0x68] sm:$0xff] %v2523
        %2588 = vst [vmem:[%s265 + $0x70] sm:$0xff] %v2524
        %2589 = vst [vmem:[%s265 + $0x78] sm:$0xff] %v2525
        %2590 = vst [vmem:[%s265 + $0x80] sm:$0xff] %v2526
        %2591 = vst [vmem:[%s265 + $0x88] sm:$0xff] %v2527
        %2592 = vst [vmem:[%s265 + $0x90] sm:$0xff] %v2528
        %2593 = vst [vmem:[%s265 + $0x98] sm:$0xff] %v2529
        %2594 = vst [vmem:[%s265 + $0xa0] sm:$0xff] %v2530
        %2595 = vst [vmem:[%s265 + $0xa8] sm:$0xff] %v2531
        %2596 = vst [vmem:[%s265 + $0xb0] sm:$0xff] %v2532
        %2597 = vst [vmem:[%s265 + $0xb8] sm:$0xff] %v2533
        %2598 = vst [vmem:[%s265 + $0xc0] sm:$0xff] %v2534
        %2599 = vst [vmem:[%s265 + $0xc8] sm:$0xff] %v2535
        %2600 = vst [vmem:[%s265 + $0xd0] sm:$0xff] %v2536
        %2601 = vst [vmem:[%s265 + $0xd8] sm:$0xff] %v2537
        %2602 = vst [vmem:[%s265 + $0xe0] sm:$0xff] %v2538
        %2603 = vst [vmem:[%s265 + $0xe8] sm:$0xff] %v2539
        %2604 = vst [vmem:[%s265 + $0xf0] sm:$0xff] %v2540
        %2605 = vst [vmem:[%s265 + $0xf8] sm:$0xff] %v2541
        %v2606 = vpack.c.bf16 %v2068, %v2064
        %v2607 = vpack.c.bf16 %v2070, %v2066
        %v2608 = vpack.c.bf16 %v2078, %v2074
        %v2609 = vpack.c.bf16 %v2080, %v2076
        %v2610 = vpack.c.bf16 %v2088, %v2084
        %v2611 = vpack.c.bf16 %v2090, %v2086
        %v2612 = vpack.c.bf16 %v2098, %v2094
        %v2613 = vpack.c.bf16 %v2100, %v2096
        %v2614 = vpack.c.bf16 %v2108, %v2104
        %v2615 = vpack.c.bf16 %v2110, %v2106
        %v2616 = vpack.c.bf16 %v2118, %v2114
        %v2617 = vpack.c.bf16 %v2120, %v2116
        %v2618 = vpack.c.bf16 %v2128, %v2124
        %v2619 = vpack.c.bf16 %v2130, %v2126
        %v2620 = vpack.c.bf16 %v2138, %v2134
        %v2621 = vpack.c.bf16 %v2140, %v2136
        %v2622 = vpack.c.bf16 %v2148, %v2144
        %v2623 = vpack.c.bf16 %v2150, %v2146
        %v2624 = vpack.c.bf16 %v2158, %v2154
        %v2625 = vpack.c.bf16 %v2160, %v2156
        %v2626 = vpack.c.bf16 %v2168, %v2164
        %v2627 = vpack.c.bf16 %v2170, %v2166
        %v2628 = vpack.c.bf16 %v2178, %v2174
        %v2629 = vpack.c.bf16 %v2180, %v2176
        %v2630 = vpack.c.bf16 %v2188, %v2184
        %v2631 = vpack.c.bf16 %v2190, %v2186
        %v2632 = vpack.c.bf16 %v2198, %v2194
        %v2633 = vpack.c.bf16 %v2200, %v2196
        %v2634 = vpack.c.bf16 %v2208, %v2204
        %v2635 = vpack.c.bf16 %v2210, %v2206
        %v2636 = vpack.c.bf16 %v2218, %v2214
        %v2637 = vpack.c.bf16 %v2220, %v2216
        %v2670 = vunpack.c.l.b16 %v2606
        %v2671 = vunpack.c.l.b16 %v2607
        %v2672 = vunpack.c.h.b16 %v2606
        %v2673 = vunpack.c.h.b16 %v2607
        %v2674 = vunpack.c.l.b16 %v2608
        %v2675 = vunpack.c.l.b16 %v2609
        %v2676 = vunpack.c.h.b16 %v2608
        %v2677 = vunpack.c.h.b16 %v2609
        %v2678 = vunpack.c.l.b16 %v2610
        %v2679 = vunpack.c.l.b16 %v2611
        %v2680 = vunpack.c.h.b16 %v2610
        %v2681 = vunpack.c.h.b16 %v2611
        %v2682 = vunpack.c.l.b16 %v2612
        %v2683 = vunpack.c.l.b16 %v2613
        %v2684 = vunpack.c.h.b16 %v2612
        %v2685 = vunpack.c.h.b16 %v2613
        %v2686 = vunpack.c.l.b16 %v2614
        %v2687 = vunpack.c.l.b16 %v2615
        %v2688 = vunpack.c.h.b16 %v2614
        %v2689 = vunpack.c.h.b16 %v2615
        %v2690 = vunpack.c.l.b16 %v2616
        %v2691 = vunpack.c.l.b16 %v2617
        %v2692 = vunpack.c.h.b16 %v2616
        %v2693 = vunpack.c.h.b16 %v2617
        %v2694 = vunpack.c.l.b16 %v2618
        %v2695 = vunpack.c.l.b16 %v2619
        %v2696 = vunpack.c.h.b16 %v2618
        %v2697 = vunpack.c.h.b16 %v2619
        %v2698 = vunpack.c.l.b16 %v2620
        %v2699 = vunpack.c.l.b16 %v2621
        %v2700 = vunpack.c.h.b16 %v2620
        %v2701 = vunpack.c.h.b16 %v2621
        %v2702 = vunpack.c.l.b16 %v2622
        %v2703 = vunpack.c.l.b16 %v2623
        %v2704 = vunpack.c.h.b16 %v2622
        %v2705 = vunpack.c.h.b16 %v2623
        %v2706 = vunpack.c.l.b16 %v2624
        %v2707 = vunpack.c.l.b16 %v2625
        %v2708 = vunpack.c.h.b16 %v2624
        %v2709 = vunpack.c.h.b16 %v2625
        %v2710 = vunpack.c.l.b16 %v2626
        %v2711 = vunpack.c.l.b16 %v2627
        %v2712 = vunpack.c.h.b16 %v2626
        %v2713 = vunpack.c.h.b16 %v2627
        %v2714 = vunpack.c.l.b16 %v2628
        %v2715 = vunpack.c.l.b16 %v2629
        %v2716 = vunpack.c.h.b16 %v2628
        %v2717 = vunpack.c.h.b16 %v2629
        %v2718 = vunpack.c.l.b16 %v2630
        %v2719 = vunpack.c.l.b16 %v2631
        %v2720 = vunpack.c.h.b16 %v2630
        %v2721 = vunpack.c.h.b16 %v2631
        %v2722 = vunpack.c.l.b16 %v2632
        %v2723 = vunpack.c.l.b16 %v2633
        %v2724 = vunpack.c.h.b16 %v2632
        %v2725 = vunpack.c.h.b16 %v2633
        %v2726 = vunpack.c.l.b16 %v2634
        %v2727 = vunpack.c.l.b16 %v2635
        %v2728 = vunpack.c.h.b16 %v2634
        %v2729 = vunpack.c.h.b16 %v2635
        %v2730 = vunpack.c.l.b16 %v2636
        %v2731 = vunpack.c.l.b16 %v2637
        %v2732 = vunpack.c.h.b16 %v2636
        %v2733 = vunpack.c.h.b16 %v2637
        %v2734 = vpack.c.b16 %v2671, %v2670
        %v2735 = vpack.c.b16 %v2673, %v2672
        %v2736 = vpack.c.b16 %v2675, %v2674
        %v2737 = vpack.c.b16 %v2677, %v2676
        %v2738 = vpack.c.b16 %v2679, %v2678
        %v2739 = vpack.c.b16 %v2681, %v2680
        %v2740 = vpack.c.b16 %v2683, %v2682
        %v2741 = vpack.c.b16 %v2685, %v2684
        %v2742 = vpack.c.b16 %v2687, %v2686
        %v2743 = vpack.c.b16 %v2689, %v2688
        %v2744 = vpack.c.b16 %v2691, %v2690
        %v2745 = vpack.c.b16 %v2693, %v2692
        %v2746 = vpack.c.b16 %v2695, %v2694
        %v2747 = vpack.c.b16 %v2697, %v2696
        %v2748 = vpack.c.b16 %v2699, %v2698
        %v2749 = vpack.c.b16 %v2701, %v2700
        %v2750 = vpack.c.b16 %v2703, %v2702
        %v2751 = vpack.c.b16 %v2705, %v2704
        %v2752 = vpack.c.b16 %v2707, %v2706
        %v2753 = vpack.c.b16 %v2709, %v2708
        %v2754 = vpack.c.b16 %v2711, %v2710
        %v2755 = vpack.c.b16 %v2713, %v2712
        %v2756 = vpack.c.b16 %v2715, %v2714
        %v2757 = vpack.c.b16 %v2717, %v2716
        %v2758 = vpack.c.b16 %v2719, %v2718
        %v2759 = vpack.c.b16 %v2721, %v2720
        %v2760 = vpack.c.b16 %v2723, %v2722
        %v2761 = vpack.c.b16 %v2725, %v2724
        %v2762 = vpack.c.b16 %v2727, %v2726
        %v2763 = vpack.c.b16 %v2729, %v2728
        %v2764 = vpack.c.b16 %v2731, %v2730
        %v2765 = vpack.c.b16 %v2733, %v2732
        %s2798 = scalar_lea.vmem %s265, 256 [#allocation9]
        %2799 = vst [vmem:[%s2798] sm:$0xff] %v2734
        %2800 = vst [vmem:[%s2798 + $0x8] sm:$0xff] %v2735
        %2801 = vst [vmem:[%s2798 + $0x10] sm:$0xff] %v2736
        %2802 = vst [vmem:[%s2798 + $0x18] sm:$0xff] %v2737
        %2803 = vst [vmem:[%s2798 + $0x20] sm:$0xff] %v2738
        %2804 = vst [vmem:[%s2798 + $0x28] sm:$0xff] %v2739
        %2805 = vst [vmem:[%s2798 + $0x30] sm:$0xff] %v2740
        %2806 = vst [vmem:[%s2798 + $0x38] sm:$0xff] %v2741
        %2807 = vst [vmem:[%s2798 + $0x40] sm:$0xff] %v2742
        %2808 = vst [vmem:[%s2798 + $0x48] sm:$0xff] %v2743
        %2809 = vst [vmem:[%s2798 + $0x50] sm:$0xff] %v2744
        %2810 = vst [vmem:[%s2798 + $0x58] sm:$0xff] %v2745
        %2811 = vst [vmem:[%s2798 + $0x60] sm:$0xff] %v2746
        %2812 = vst [vmem:[%s2798 + $0x68] sm:$0xff] %v2747
        %2813 = vst [vmem:[%s2798 + $0x70] sm:$0xff] %v2748
        %2814 = vst [vmem:[%s2798 + $0x78] sm:$0xff] %v2749
        %2815 = vst [vmem:[%s2798 + $0x80] sm:$0xff] %v2750
        %2816 = vst [vmem:[%s2798 + $0x88] sm:$0xff] %v2751
        %2817 = vst [vmem:[%s2798 + $0x90] sm:$0xff] %v2752
        %2818 = vst [vmem:[%s2798 + $0x98] sm:$0xff] %v2753
        %2819 = vst [vmem:[%s2798 + $0xa0] sm:$0xff] %v2754
        %2820 = vst [vmem:[%s2798 + $0xa8] sm:$0xff] %v2755
        %2821 = vst [vmem:[%s2798 + $0xb0] sm:$0xff] %v2756
        %2822 = vst [vmem:[%s2798 + $0xb8] sm:$0xff] %v2757
        %2823 = vst [vmem:[%s2798 + $0xc0] sm:$0xff] %v2758
        %2824 = vst [vmem:[%s2798 + $0xc8] sm:$0xff] %v2759
        %2825 = vst [vmem:[%s2798 + $0xd0] sm:$0xff] %v2760
        %2826 = vst [vmem:[%s2798 + $0xd8] sm:$0xff] %v2761
        %2827 = vst [vmem:[%s2798 + $0xe0] sm:$0xff] %v2762
        %2828 = vst [vmem:[%s2798 + $0xe8] sm:$0xff] %v2763
        %2829 = vst [vmem:[%s2798 + $0xf0] sm:$0xff] %v2764
        %2830 = vst [vmem:[%s2798 + $0xf8] sm:$0xff] %v2765
        %v2831 = vpack.c.bf16 %v2228, %v2224
        %v2832 = vpack.c.bf16 %v2230, %v2226
        %v2833 = vpack.c.bf16 %v2238, %v2234
        %v2834 = vpack.c.bf16 %v2240, %v2236
        %v2835 = vpack.c.bf16 %v2248, %v2244
        %v2836 = vpack.c.bf16 %v2250, %v2246
        %v2837 = vpack.c.bf16 %v2258, %v2254
        %v2838 = vpack.c.bf16 %v2260, %v2256
        %v2839 = vpack.c.bf16 %v2268, %v2264
        %v2840 = vpack.c.bf16 %v2270, %v2266
        %v2841 = vpack.c.bf16 %v2278, %v2274
        %v2842 = vpack.c.bf16 %v2280, %v2276
        %v2843 = vpack.c.bf16 %v2288, %v2284
        %v2844 = vpack.c.bf16 %v2290, %v2286
        %v2845 = vpack.c.bf16 %v2298, %v2294
        %v2846 = vpack.c.bf16 %v2300, %v2296
        %v2847 = vpack.c.bf16 %v2308, %v2304
        %v2848 = vpack.c.bf16 %v2310, %v2306
        %v2849 = vpack.c.bf16 %v2318, %v2314
        %v2850 = vpack.c.bf16 %v2320, %v2316
        %v2851 = vpack.c.bf16 %v2328, %v2324
        %v2852 = vpack.c.bf16 %v2330, %v2326
        %v2853 = vpack.c.bf16 %v2338, %v2334
        %v2854 = vpack.c.bf16 %v2340, %v2336
        %v2855 = vpack.c.bf16 %v2348, %v2344
        %v2856 = vpack.c.bf16 %v2350, %v2346
        %v2857 = vpack.c.bf16 %v2358, %v2354
        %v2858 = vpack.c.bf16 %v2360, %v2356
        %v2859 = vpack.c.bf16 %v2368, %v2364
        %v2860 = vpack.c.bf16 %v2370, %v2366
        %v2861 = vpack.c.bf16 %v2378, %v2374
        %v2862 = vpack.c.bf16 %v2380, %v2376
        %v2895 = vunpack.c.l.b16 %v2831
        %v2896 = vunpack.c.l.b16 %v2832
        %v2897 = vunpack.c.h.b16 %v2831
        %v2898 = vunpack.c.h.b16 %v2832
        %v2899 = vunpack.c.l.b16 %v2833
        %v2900 = vunpack.c.l.b16 %v2834
        %v2901 = vunpack.c.h.b16 %v2833
        %v2902 = vunpack.c.h.b16 %v2834
        %v2903 = vunpack.c.l.b16 %v2835
        %v2904 = vunpack.c.l.b16 %v2836
        %v2905 = vunpack.c.h.b16 %v2835
        %v2906 = vunpack.c.h.b16 %v2836
        %v2907 = vunpack.c.l.b16 %v2837
        %v2908 = vunpack.c.l.b16 %v2838
        %v2909 = vunpack.c.h.b16 %v2837
        %v2910 = vunpack.c.h.b16 %v2838
        %v2911 = vunpack.c.l.b16 %v2839
        %v2912 = vunpack.c.l.b16 %v2840
        %v2913 = vunpack.c.h.b16 %v2839
        %v2914 = vunpack.c.h.b16 %v2840
        %v2915 = vunpack.c.l.b16 %v2841
        %v2916 = vunpack.c.l.b16 %v2842
        %v2917 = vunpack.c.h.b16 %v2841
        %v2918 = vunpack.c.h.b16 %v2842
        %v2919 = vunpack.c.l.b16 %v2843
        %v2920 = vunpack.c.l.b16 %v2844
        %v2921 = vunpack.c.h.b16 %v2843
        %v2922 = vunpack.c.h.b16 %v2844
        %v2923 = vunpack.c.l.b16 %v2845
        %v2924 = vunpack.c.l.b16 %v2846
        %v2925 = vunpack.c.h.b16 %v2845
        %v2926 = vunpack.c.h.b16 %v2846
        %v2927 = vunpack.c.l.b16 %v2847
        %v2928 = vunpack.c.l.b16 %v2848
        %v2929 = vunpack.c.h.b16 %v2847
        %v2930 = vunpack.c.h.b16 %v2848
        %v2931 = vunpack.c.l.b16 %v2849
        %v2932 = vunpack.c.l.b16 %v2850
        %v2933 = vunpack.c.h.b16 %v2849
        %v2934 = vunpack.c.h.b16 %v2850
        %v2935 = vunpack.c.l.b16 %v2851
        %v2936 = vunpack.c.l.b16 %v2852
        %v2937 = vunpack.c.h.b16 %v2851
        %v2938 = vunpack.c.h.b16 %v2852
        %v2939 = vunpack.c.l.b16 %v2853
        %v2940 = vunpack.c.l.b16 %v2854
        %v2941 = vunpack.c.h.b16 %v2853
        %v2942 = vunpack.c.h.b16 %v2854
        %v2943 = vunpack.c.l.b16 %v2855
        %v2944 = vunpack.c.l.b16 %v2856
        %v2945 = vunpack.c.h.b16 %v2855
        %v2946 = vunpack.c.h.b16 %v2856
        %v2947 = vunpack.c.l.b16 %v2857
        %v2948 = vunpack.c.l.b16 %v2858
        %v2949 = vunpack.c.h.b16 %v2857
        %v2950 = vunpack.c.h.b16 %v2858
        %v2951 = vunpack.c.l.b16 %v2859
        %v2952 = vunpack.c.l.b16 %v2860
        %v2953 = vunpack.c.h.b16 %v2859
        %v2954 = vunpack.c.h.b16 %v2860
        %v2955 = vunpack.c.l.b16 %v2861
        %v2956 = vunpack.c.l.b16 %v2862
        %v2957 = vunpack.c.h.b16 %v2861
        %v2958 = vunpack.c.h.b16 %v2862
        %v2959 = vpack.c.b16 %v2896, %v2895
        %v2960 = vpack.c.b16 %v2898, %v2897
        %v2961 = vpack.c.b16 %v2900, %v2899
        %v2962 = vpack.c.b16 %v2902, %v2901
        %v2963 = vpack.c.b16 %v2904, %v2903
        %v2964 = vpack.c.b16 %v2906, %v2905
        %v2965 = vpack.c.b16 %v2908, %v2907
        %v2966 = vpack.c.b16 %v2910, %v2909
        %v2967 = vpack.c.b16 %v2912, %v2911
        %v2968 = vpack.c.b16 %v2914, %v2913
        %v2969 = vpack.c.b16 %v2916, %v2915
        %v2970 = vpack.c.b16 %v2918, %v2917
        %v2971 = vpack.c.b16 %v2920, %v2919
        %v2972 = vpack.c.b16 %v2922, %v2921
        %v2973 = vpack.c.b16 %v2924, %v2923
        %v2974 = vpack.c.b16 %v2926, %v2925
        %v2975 = vpack.c.b16 %v2928, %v2927
        %v2976 = vpack.c.b16 %v2930, %v2929
        %v2977 = vpack.c.b16 %v2932, %v2931
        %v2978 = vpack.c.b16 %v2934, %v2933
        %v2979 = vpack.c.b16 %v2936, %v2935
        %v2980 = vpack.c.b16 %v2938, %v2937
        %v2981 = vpack.c.b16 %v2940, %v2939
        %v2982 = vpack.c.b16 %v2942, %v2941
        %v2983 = vpack.c.b16 %v2944, %v2943
        %v2984 = vpack.c.b16 %v2946, %v2945
        %v2985 = vpack.c.b16 %v2948, %v2947
        %v2986 = vpack.c.b16 %v2950, %v2949
        %v2987 = vpack.c.b16 %v2952, %v2951
        %v2988 = vpack.c.b16 %v2954, %v2953
        %v2989 = vpack.c.b16 %v2956, %v2955
        %v2990 = vpack.c.b16 %v2958, %v2957
        %s3023 = scalar_lea.vmem %s265, 512 [#allocation9]
        %3024 = vst [vmem:[%s3023] sm:$0xff] %v2959
        %3025 = vst [vmem:[%s3023 + $0x8] sm:$0xff] %v2960
        %3026 = vst [vmem:[%s3023 + $0x10] sm:$0xff] %v2961
        %3027 = vst [vmem:[%s3023 + $0x18] sm:$0xff] %v2962
        %3028 = vst [vmem:[%s3023 + $0x20] sm:$0xff] %v2963
        %3029 = vst [vmem:[%s3023 + $0x28] sm:$0xff] %v2964
        %3030 = vst [vmem:[%s3023 + $0x30] sm:$0xff] %v2965
        %3031 = vst [vmem:[%s3023 + $0x38] sm:$0xff] %v2966
        %3032 = vst [vmem:[%s3023 + $0x40] sm:$0xff] %v2967
        %3033 = vst [vmem:[%s3023 + $0x48] sm:$0xff] %v2968
        %3034 = vst [vmem:[%s3023 + $0x50] sm:$0xff] %v2969
        %3035 = vst [vmem:[%s3023 + $0x58] sm:$0xff] %v2970
        %3036 = vst [vmem:[%s3023 + $0x60] sm:$0xff] %v2971
        %3037 = vst [vmem:[%s3023 + $0x68] sm:$0xff] %v2972
        %3038 = vst [vmem:[%s3023 + $0x70] sm:$0xff] %v2973
        %3039 = vst [vmem:[%s3023 + $0x78] sm:$0xff] %v2974
        %3040 = vst [vmem:[%s3023 + $0x80] sm:$0xff] %v2975
        %3041 = vst [vmem:[%s3023 + $0x88] sm:$0xff] %v2976
        %3042 = vst [vmem:[%s3023 + $0x90] sm:$0xff] %v2977
        %3043 = vst [vmem:[%s3023 + $0x98] sm:$0xff] %v2978
        %3044 = vst [vmem:[%s3023 + $0xa0] sm:$0xff] %v2979
        %3045 = vst [vmem:[%s3023 + $0xa8] sm:$0xff] %v2980
        %3046 = vst [vmem:[%s3023 + $0xb0] sm:$0xff] %v2981
        %3047 = vst [vmem:[%s3023 + $0xb8] sm:$0xff] %v2982
        %3048 = vst [vmem:[%s3023 + $0xc0] sm:$0xff] %v2983
        %3049 = vst [vmem:[%s3023 + $0xc8] sm:$0xff] %v2984
        %3050 = vst [vmem:[%s3023 + $0xd0] sm:$0xff] %v2985
        %3051 = vst [vmem:[%s3023 + $0xd8] sm:$0xff] %v2986
        %3052 = vst [vmem:[%s3023 + $0xe0] sm:$0xff] %v2987
        %3053 = vst [vmem:[%s3023 + $0xe8] sm:$0xff] %v2988
        %3054 = vst [vmem:[%s3023 + $0xf0] sm:$0xff] %v2989
        %3055 = vst [vmem:[%s3023 + $0xf8] sm:$0xff] %v2990
        %s3056 = sand.u32 %s109, 1
        %s3057 = scalar_lea.sflag [#allocation5], %s3056
        %s3058 = sand.u32 %s109, 1
        %s3059 = smul.addr %s3058, 768
        %s3060 = scalar_lea.vmem [#allocation9], %s3059
        // Predicated region
        $region45: #{tpu_custom_call.1} parent=31 // pred_check
          %p3061 = pneg %p119
        $region46: #{tpu_custom_call.1} parent=31 // pred_check_branch
          %3063 = sbr.rel (%p3061) target = $region48
        $region47: #{tpu_custom_call.1} parent=31 // pred_region
          %s3065 = ssub.s32 12288, 12288
          %3066 = vsyncadd %s3057, %s3065
          %s3067 = smul.addr %s23, 192
          %s3068 = smul.addr %s3067, 64
          %s3069 = scalar_lea.hbm %s3, %s3068
          %s3070 = sshll.u32 %s3060, 4
          %s3071 = int_to_ptr.vmem [resolvable:$true] %s3070
          %3076 = dma.vmem_to_hbm [thread:$0]  %s3071, 12288, %s3069, %s3057, 128, 128, 8
        $region48: #{tpu_custom_call.1} parent=31 // pred_fallthru
          _
      $region32: #{tpu_custom_call.1} parent=5 // pred_fallthru
        _
      %p3077 = scmp.le.s32.totalorder 2, %s18
      // Predicated region
      $region49: #{tpu_custom_call.1} parent=5 // pred_check
        %p3078 = pneg %p3077
      $region50: #{tpu_custom_call.1} parent=5 // pred_check_branch
        %3080 = sbr.rel (%p3078) target = $region52
      $region51: #{tpu_custom_call.1} parent=5 // pred_region
        %s3081 = ssub.s32 %s18, 2
        // Predicated region
        $region53: #{tpu_custom_call.1} parent=51 // pred_check
          %p3082 = pneg %p125
        $region54: #{tpu_custom_call.1} parent=51 // pred_check_branch
          %3084 = sbr.rel (%p3082) target = $region56
        $region55: #{tpu_custom_call.1} parent=51 // pred_region
          %s3085 = sand.u32 %s110, 1
          %s3086 = scalar_lea.sflag [#allocation5], %s3085
          %s3087 = sand.u32 %s110, 1
          %s3088 = smul.addr %s3087, 768
          %s3089 = scalar_lea.vmem [#allocation9], %s3088
          %3090 = dma.done %s3086, 12288
        $region56: #{tpu_custom_call.1} parent=51 // pred_fallthru
          _
      $region52: #{tpu_custom_call.1} parent=5 // pred_fallthru
        _
    $region6: #{tpu_custom_call.1} parent=1 // loop_footer
      %s22 = sadd.s32 1, %s18
    $region7: #{tpu_custom_call.1} parent=1 // loop_footer_branch
      %17 = sbr.rel target = $region3
    $region8: #{tpu_custom_call.1} parent=1 // loop_exit
      _
    %3091 = vsyncpa [#allocation4], 1
    %s3092 = scalar_lea.sflag [#allocation4], 1
    %3093 = vsyncpa %s3092, 1
    %3094 = vsyncpa [#allocation7], 1
    %s3095 = scalar_lea.sflag [#allocation7], 1
    %3096 = vsyncpa %s3095, 1
    %3097 = vsyncpa [#allocation5], 1
    %s3098 = scalar_lea.sflag [#allocation5], 1
    %3099 = vsyncpa %s3098, 1

</llo_original>
